<compile_context>
chip_gen: v5e
topology: v5e:2x2
jax: 0.10.0
libtpu: 0.0.40
codegen_flags: <defaults>
</compile_context>

<pallas_src>
import functools

import jax
import jax.numpy as jnp
from jax import lax
from jax.experimental import pallas as pl
from jax.experimental.pallas import tpu as pltpu

_VMEM_LIMIT_BYTES = 48 * 1024 * 1024  # > v5e 16 MiB scoped default, < v7x 64 MiB physical


# ---------------------------------------------------------------- kernels ----
def _matmul_bias_kernel(p_ref, w_ref, b_ref, o_ref, *, relu):
    # out = (P @ W + b), optionally ReLU'd.  bf16 operands, f32 accumulate.
    acc = jnp.dot(p_ref[...], w_ref[...], preferred_element_type=jnp.float32)
    acc = acc + b_ref[...]                       # (1, Cp) broadcasts over rows
    if relu:
        acc = jnp.maximum(acc, 0.0)
    o_ref[...] = acc.astype(o_ref.dtype)


def _matmul_bias_residual_kernel(p_ref, w_ref, b_ref, s_ref, o_ref):
    # conv2 matmul + bias, identity residual added on the VPU in f32
    # (no eye-matrix matmul for the identity shortcut).
    acc = jnp.dot(p_ref[...], w_ref[...], preferred_element_type=jnp.float32)
    acc = acc + b_ref[...] + s_ref[...].astype(jnp.float32)
    o_ref[...] = acc.astype(o_ref.dtype)


def _matmul_bias_proj_residual_kernel(p_ref, w_ref, b_ref, s_ref, ws_ref, bs_ref, o_ref):
    # conv2 matmul + bias, fused with the 1x1 projection shortcut (second dot).
    acc = jnp.dot(p_ref[...], w_ref[...], preferred_element_type=jnp.float32)
    acc = acc + b_ref[...]
    acc = acc + jnp.dot(s_ref[...], ws_ref[...], preferred_element_type=jnp.float32)
    acc = acc + bs_ref[...]
    o_ref[...] = acc.astype(o_ref.dtype)


# ---------------------------------------------------------------- helpers ----
def _round_up(v, t):
    return (v + t - 1) // t * t


def _pick_block_rows(m, bytes_per_row, budget=16 << 20):
    """Row tile over the (N*Ho*Wo) pixel dim: as big as the VMEM budget allows
    (double-buffered row-tiled arrays), but keep >= 2 grid steps when possible
    so both v7x TensorCores get work.  Multiple of 16 (bf16 sublane packing)."""
    tm = 1024
    while tm > 64 and 2 * tm * bytes_per_row > budget:
        tm //= 2
    if m <= tm:
        tm = max(16, _round_up(pl.cdiv(m, 2), 16))
    return tm


def _weight_matrix(w, cp):
    """(Cout, Cin, KH, KW) -> bf16 (KH*KW*Cin, cp); tap order (kh, kw, cin)
    matches _im2col.  Columns zero-padded to the lane-dense width cp."""
    cout, cin, kh, kw = w.shape
    wm = jnp.transpose(w, (2, 3, 1, 0)).reshape(kh * kw * cin, cout)
    wm = jnp.pad(wm, ((0, 0), (0, cp - cout)))
    return wm.astype(jnp.bfloat16)


def _bias_row(b, cp):
    return jnp.pad(b, (0, cp - b.shape[0])).reshape(1, cp).astype(jnp.float32)


def _im2col(x_nhwc, ksize, stride, pad):
    """Patch extraction (plain-JAX glue). Returns ((N*Ho*Wo, k*k*C), Ho, Wo)."""
    N, H, W, C = x_nhwc.shape
    xp = jnp.pad(x_nhwc, ((0, 0), (pad, pad), (pad, pad), (0, 0)))
    Ho = (H + 2 * pad - ksize) // stride + 1
    Wo = (W + 2 * pad - ksize) // stride + 1
    cols = []
    for kh in range(ksize):
        for kw in range(ksize):
            cols.append(xp[:, kh:kh + stride * Ho:stride, kw:kw + stride * Wo:stride, :])
    patches = jnp.concatenate(cols, axis=-1)     # (N, Ho, Wo, k*k*C), tap order (kh,kw,c)
    return patches.reshape(N * Ho * Wo, ksize * ksize * C), Ho, Wo


# -------------------------------------------------------- pallas launchers ---
def _launch(kernel, arrays, in_specs, m, cp, out_dtype, block_rows):
    grid = (pl.cdiv(m, block_rows),)
    return pl.pallas_call(
        kernel,
        out_shape=jax.ShapeDtypeStruct((m, cp), out_dtype),
        grid_spec=pltpu.PrefetchScalarGridSpec(
            num_scalar_prefetch=0,
            grid=grid,
            in_specs=in_specs,
            out_specs=pl.BlockSpec((block_rows, cp), lambda i: (i, 0)),
        ),
        compiler_params=pltpu.CompilerParams(
            dimension_semantics=("parallel",),
            vmem_limit_bytes=_VMEM_LIMIT_BYTES,
        ),
    )(*arrays)


def _conv_matmul(p, w, b, *, relu, out_dtype, block_rows):
    m, k = p.shape
    cp = w.shape[1]
    specs = [
        pl.BlockSpec((block_rows, k), lambda i: (i, 0)),   # im2col patch rows (bf16)
        pl.BlockSpec((k, cp), lambda i: (0, 0)),           # weight, resident
        pl.BlockSpec((1, cp), lambda i: (0, 0)),           # bias row (f32)
    ]
    kern = functools.partial(_matmul_bias_kernel, relu=relu)
    return _launch(kern, [p, w, b], specs, m, cp, out_dtype, block_rows)


def _conv_matmul_identity_residual(p, w, b, s, *, out_dtype, block_rows):
    m, k = p.shape
    cp = w.shape[1]
    specs = [
        pl.BlockSpec((block_rows, k), lambda i: (i, 0)),
        pl.BlockSpec((k, cp), lambda i: (0, 0)),
        pl.BlockSpec((1, cp), lambda i: (0, 0)),
        pl.BlockSpec((block_rows, cp), lambda i: (i, 0)),  # residual rows (f32)
    ]
    return _launch(_matmul_bias_residual_kernel, [p, w, b, s], specs,
                   m, cp, out_dtype, block_rows)


def _conv_matmul_proj_residual(p, w, b, s, ws, bs, *, out_dtype, block_rows):
    m, k = p.shape
    cp = w.shape[1]
    ks = s.shape[1]
    specs = [
        pl.BlockSpec((block_rows, k), lambda i: (i, 0)),
        pl.BlockSpec((k, cp), lambda i: (0, 0)),
        pl.BlockSpec((1, cp), lambda i: (0, 0)),
        pl.BlockSpec((block_rows, ks), lambda i: (i, 0)),  # shortcut rows (bf16)
        pl.BlockSpec((ks, cp), lambda i: (0, 0)),          # 1x1 shortcut weight
        pl.BlockSpec((1, cp), lambda i: (0, 0)),           # shortcut bias (f32)
    ]
    return _launch(_matmul_bias_proj_residual_kernel, [p, w, b, s, ws, bs], specs,
                   m, cp, out_dtype, block_rows)


# ---------------------------------------------------------------- forward ----
def residual_block_forward(x_nchw, params, stride=1):
    x = jnp.transpose(x_nchw, (0, 2, 3, 1))      # NCHW -> NHWC
    N, H, W, Cin = x.shape
    Cout = params["w1"].shape[0]
    Cp = _round_up(Cout, 128)                    # lane-dense output columns

    xb = x.astype(jnp.bfloat16)

    # conv1 (3x3, stride, pad=1) + bias + ReLU  ->  bf16 feature map
    p1, Ho, Wo = _im2col(xb, 3, stride, 1)
    M = N * Ho * Wo
    w1 = _weight_matrix(params["w1"], Cp)
    b1 = _bias_row(params["b1"], Cp)
    br1 = _pick_block_rows(M, p1.shape[1] * 2 + Cp * 2)
    y1 = _conv_matmul(p1, w1, b1, relu=True, out_dtype=jnp.bfloat16, block_rows=br1)

    # conv2 (3x3, stride 1, pad=1) + bias, fused with the residual add
    y1_map = y1[:, :Cout].reshape(N, Ho, Wo, Cout)
    p2, _, _ = _im2col(y1_map, 3, 1, 1)
    w2 = _weight_matrix(params["w2"], Cp)
    b2 = _bias_row(params["b2"], Cp)

    if "ws" in params:
        # projection shortcut: 1x1 conv with stride, fused as a second MXU dot
        s = x[:, ::stride, ::stride, :].reshape(M, Cin).astype(jnp.bfloat16)
        ws = _weight_matrix(params["ws"], Cp)
        bs = _bias_row(params["bs"], Cp)
        br2 = _pick_block_rows(M, p2.shape[1] * 2 + Cin * 2 + Cp * 4)
        out = _conv_matmul_proj_residual(p2, w2, b2, s, ws, bs,
                                         out_dtype=jnp.float32, block_rows=br2)
    else:
        # identity shortcut (Cin == Cout, stride == 1): plain f32 add in-kernel
        s = jnp.pad(x.reshape(M, Cin), ((0, 0), (0, Cp - Cin)))
        br2 = _pick_block_rows(M, p2.shape[1] * 2 + Cp * 4 + Cp * 4)
        out = _conv_matmul_identity_residual(p2, w2, b2, s,
                                             out_dtype=jnp.float32, block_rows=br2)

    out = out[:, :Cout].reshape(N, Ho, Wo, Cout)
    return jnp.transpose(out, (0, 3, 1, 2)).astype(x_nchw.dtype)   # back to NCHW


# ------------------------------------------------------------- params/ref ----
def init_params(key, in_channels, out_channels, stride):
    keys = jax.random.split(key, 6)

    def conv_init(kw, kb, cout, cin, k):
        fan_in = cin * k * k
        bound = 1.0 / float(fan_in) ** 0.5
        w = jax.random.uniform(kw, (cout, cin, k, k), jnp.float32, -bound, bound)
        b = jax.random.uniform(kb, (cout,), jnp.float32, -bound, bound)
        return w, b

    params = {}
    params["w1"], params["b1"] = conv_init(keys[0], keys[1], out_channels, in_channels, 3)
    params["w2"], params["b2"] = conv_init(keys[2], keys[3], out_channels, out_channels, 3)
    if stride != 1 or in_channels != out_channels:
        params["ws"], params["bs"] = conv_init(keys[4], keys[5], out_channels, in_channels, 1)
    return params


def reference_forward(x, params, stride):
    dn = ("NCHW", "OIHW", "NCHW")

    def conv(inp, w, b, s, p):
        y = lax.conv_general_dilated(inp, w, (s, s), ((p, p), (p, p)), dimension_numbers=dn)
        return y + b[None, :, None, None]

    y = jnp.maximum(conv(x, params["w1"], params["b1"], stride, 1), 0.0)
    y = conv(y, params["w2"], params["b2"], 1, 1)
    if "ws" in params:
        sc = conv(x, params["ws"], params["bs"], stride, 0)
    else:
        sc = x
    return y + sc


# --------------------------------------------------------------------- main --
if __name__ == "__main__":
    root = jax.random.PRNGKey(0)

    def run_case(name, n, cin, cout, h, w, stride, case_id):
        kx, kp = jax.random.split(jax.random.fold_in(root, case_id))
        x = jax.random.normal(kx, (n, cin, h, w), jnp.float32)
        params = init_params(kp, cin, cout, stride)
        fwd = jax.jit(functools.partial(residual_block_forward, stride=stride))
        out = jax.block_until_ready(fwd(x, params))
        ref = reference_forward(x, params, stride)
        assert out.shape == ref.shape, (name, out.shape, ref.shape)
        err = float(jnp.max(jnp.abs(out - ref)))
        scale = float(jnp.max(jnp.abs(ref)))
        # bf16 MXU inputs + f32 accumulation -> relative tolerance check
        tol = 2e-2 + 2e-2 * scale
        assert err < tol, f"{name}: max abs err {err} vs tol {tol}"
        return err

    run_case("projection", 2, 4, 8, 16, 16, 1, 0)   # Cin != Cout -> 1x1 projection shortcut
    run_case("identity", 2, 8, 8, 16, 16, 1, 1)     # identity shortcut -> direct-add kernel
    run_case("strided", 2, 4, 8, 16, 16, 2, 2)      # stride-2 projection shortcut

    print("KERNEL_OK")
</pallas_src>

<mosaic_0001>
module attributes {stable_mosaic.version = 11 : i64} {
  func.func @_matmul_bias_kernel(%arg0: i32, %arg1: memref<256x36xbf16, #tpu.memory_space<vmem>>, %arg2: memref<36x128xbf16, #tpu.memory_space<vmem>>, %arg3: memref<1x128xf32, #tpu.memory_space<vmem>>, %arg4: memref<256x128xbf16, #tpu.memory_space<vmem>>) attributes {dimension_semantics = [#tpu.dimension_semantics<parallel>], iteration_bounds = array<i64: 2>, scalar_prefetch = 0 : i64, scratch_operands = 0 : i64, tpu.core_type = #tpu.core_type<tc>, window_params = [{transform_indices = @transform_0, window_bounds = array<i64: 256, 36>}, {pipeline_mode = #tpu.pipeline_mode<synchronous>, transform_indices = @transform_1, window_bounds = array<i64: 36, 128>}, {pipeline_mode = #tpu.pipeline_mode<synchronous>, transform_indices = @transform_2, window_bounds = array<i64: 1, 128>}, {transform_indices = @transform_3, window_bounds = array<i64: 256, 128>}]} {
    %c0 = arith.constant 0 : index
    %c0_0 = arith.constant 0 : index
    %0 = vector.load %arg1[%c0, %c0_0] : memref<256x36xbf16, #tpu.memory_space<vmem>>, vector<256x36xbf16>
    %c0_1 = arith.constant 0 : index
    %c0_2 = arith.constant 0 : index
    %1 = vector.load %arg2[%c0_1, %c0_2] : memref<36x128xbf16, #tpu.memory_space<vmem>>, vector<36x128xbf16>
    %cst = arith.constant dense<0.000000e+00> : vector<256x128xf32>
    %2 = tpu.matmul %0, %1, %cst {dimension_numbers = #tpu.dot_dimension_numbers<[1], [0], [0], [1], [0, 0, 1, 1], [], []>} : vector<256x36xbf16>, vector<36x128xbf16>, vector<256x128xf32> -> vector<256x128xf32>
    %c0_3 = arith.constant 0 : index
    %c0_4 = arith.constant 0 : index
    %3 = vector.load %arg3[%c0_3, %c0_4] : memref<1x128xf32, #tpu.memory_space<vmem>>, vector<1x128xf32>
    %4 = vector.broadcast %3 : vector<1x128xf32> to vector<256x128xf32>
    %5 = arith.addf %2, %4 : vector<256x128xf32>
    %cst_5 = arith.constant 0.000000e+00 : f32
    %6 = vector.broadcast %cst_5 : f32 to vector<256x128xf32>
    %7 = arith.maximumf %5, %6 : vector<256x128xf32>
    %8 = arith.truncf %7 : vector<256x128xf32> to vector<256x128xbf16>
    %c0_6 = arith.constant 0 : index
    %c0_7 = arith.constant 0 : index
    %9 = vector.load %arg4[%c0_6, %c0_7] : memref<256x128xbf16, #tpu.memory_space<vmem>>, vector<256x128xbf16>
    tpu.vector_store %arg4[%c0_6, %c0_7], %8 {strides = array<i32>} : memref<256x128xbf16, #tpu.memory_space<vmem>>, vector<256x128xbf16>,
    return
  }
  func.func @transform_0(%arg0: i32) -> (i32, i32) {
    %c0_i32 = arith.constant 0 : i32
    %c0_i32_0 = arith.constant 0 : i32
    return %arg0, %c0_i32 : i32, i32
  }
  func.func @transform_1(%arg0: i32) -> (i32, i32) {
    %c0_i32 = arith.constant 0 : i32
    %c0_i32_0 = arith.constant 0 : i32
    %c0_i32_1 = arith.constant 0 : i32
    return %c0_i32, %c0_i32_0 : i32, i32
  }
  func.func @transform_2(%arg0: i32) -> (i32, i32) {
    %c0_i32 = arith.constant 0 : i32
    %c0_i32_0 = arith.constant 0 : i32
    %c0_i32_1 = arith.constant 0 : i32
    return %c0_i32, %c0_i32_0 : i32, i32
  }
  func.func @transform_3(%arg0: i32) -> (i32, i32) {
    %c0_i32 = arith.constant 0 : i32
    %c0_i32_0 = arith.constant 0 : i32
    return %arg0, %c0_i32 : i32, i32
  }
}

module attributes {stable_mosaic.version = 11 : i64} {
  func.func @_matmul_bias_proj_residual_kernel(%arg0: i32, %arg1: memref<256x72xbf16, #tpu.memory_space<vmem>>, %arg2: memref<72x128xbf16, #tpu.memory_space<vmem>>, %arg3: memref<1x128xf32, #tpu.memory_space<vmem>>, %arg4: memref<256x4xbf16, #tpu.memory_space<vmem>>, %arg5: memref<4x128xbf16, #tpu.memory_space<vmem>>, %arg6: memref<1x128xf32, #tpu.memory_space<vmem>>, %arg7: memref<256x128xf32, #tpu.memory_space<vmem>>) attributes {dimension_semantics = [#tpu.dimension_semantics<parallel>], iteration_bounds = array<i64: 2>, scalar_prefetch = 0 : i64, scratch_operands = 0 : i64, tpu.core_type = #tpu.core_type<tc>, window_params = [{transform_indices = @transform_0, window_bounds = array<i64: 256, 72>}, {pipeline_mode = #tpu.pipeline_mode<synchronous>, transform_indices = @transform_1, window_bounds = array<i64: 72, 128>}, {pipeline_mode = #tpu.pipeline_mode<synchronous>, transform_indices = @transform_2, window_bounds = array<i64: 1, 128>}, {transform_indices = @transform_3, window_bounds = array<i64: 256, 4>}, {pipeline_mode = #tpu.pipeline_mode<synchronous>, transform_indices = @transform_4, window_bounds = array<i64: 4, 128>}, {pipeline_mode = #tpu.pipeline_mode<synchronous>, transform_indices = @transform_5, window_bounds = array<i64: 1, 128>}, {transform_indices = @transform_6, window_bounds = array<i64: 256, 128>}]} {
    %c0 = arith.constant 0 : index
    %c0_0 = arith.constant 0 : index
    %0 = vector.load %arg1[%c0, %c0_0] : memref<256x72xbf16, #tpu.memory_space<vmem>>, vector<256x72xbf16>
    %c0_1 = arith.constant 0 : index
    %c0_2 = arith.constant 0 : index
    %1 = vector.load %arg2[%c0_1, %c0_2] : memref<72x128xbf16, #tpu.memory_space<vmem>>, vector<72x128xbf16>
    %cst = arith.constant dense<0.000000e+00> : vector<256x128xf32>
    %2 = tpu.matmul %0, %1, %cst {dimension_numbers = #tpu.dot_dimension_numbers<[1], [0], [0], [1], [0, 0, 1, 1], [], []>} : vector<256x72xbf16>, vector<72x128xbf16>, vector<256x128xf32> -> vector<256x128xf32>
    %c0_3 = arith.constant 0 : index
    %c0_4 = arith.constant 0 : index
    %3 = vector.load %arg3[%c0_3, %c0_4] : memref<1x128xf32, #tpu.memory_space<vmem>>, vector<1x128xf32>
    %4 = vector.broadcast %3 : vector<1x128xf32> to vector<256x128xf32>
    %5 = arith.addf %2, %4 : vector<256x128xf32>
    %c0_5 = arith.constant 0 : index
    %c0_6 = arith.constant 0 : index
    %6 = vector.load %arg4[%c0_5, %c0_6] : memref<256x4xbf16, #tpu.memory_space<vmem>>, vector<256x4xbf16>
    %c0_7 = arith.constant 0 : index
    %c0_8 = arith.constant 0 : index
    %7 = vector.load %arg5[%c0_7, %c0_8] : memref<4x128xbf16, #tpu.memory_space<vmem>>, vector<4x128xbf16>
    %cst_9 = arith.constant dense<0.000000e+00> : vector<256x128xf32>
    %8 = tpu.matmul %6, %7, %cst_9 {dimension_numbers = #tpu.dot_dimension_numbers<[1], [0], [0], [1], [0, 0, 1, 1], [], []>} : vector<256x4xbf16>, vector<4x128xbf16>, vector<256x128xf32> -> vector<256x128xf32>
    %9 = arith.addf %5, %8 : vector<256x128xf32>
    %c0_10 = arith.constant 0 : index
    %c0_11 = arith.constant 0 : index
    %10 = vector.load %arg6[%c0_10, %c0_11] : memref<1x128xf32, #tpu.memory_space<vmem>>, vector<1x128xf32>
    %11 = vector.broadcast %10 : vector<1x128xf32> to vector<256x128xf32>
    %12 = arith.addf %9, %11 : vector<256x128xf32>
    %c0_12 = arith.constant 0 : index
    %c0_13 = arith.constant 0 : index
    %13 = vector.load %arg7[%c0_12, %c0_13] : memref<256x128xf32, #tpu.memory_space<vmem>>, vector<256x128xf32>
    tpu.vector_store %arg7[%c0_12, %c0_13], %12 {strides = array<i32>} : memref<256x128xf32, #tpu.memory_space<vmem>>, vector<256x128xf32>,
    return
  }
  func.func @transform_0(%arg0: i32) -> (i32, i32) {
    %c0_i32 = arith.constant 0 : i32
    %c0_i32_0 = arith.constant 0 : i32
    return %arg0, %c0_i32 : i32, i32
  }
  func.func @transform_1(%arg0: i32) -> (i32, i32) {
    %c0_i32 = arith.constant 0 : i32
    %c0_i32_0 = arith.constant 0 : i32
    %c0_i32_1 = arith.constant 0 : i32
    return %c0_i32, %c0_i32_0 : i32, i32
  }
  func.func @transform_2(%arg0: i32) -> (i32, i32) {
    %c0_i32 = arith.constant 0 : i32
    %c0_i32_0 = arith.constant 0 : i32
    %c0_i32_1 = arith.constant 0 : i32
    return %c0_i32, %c0_i32_0 : i32, i32
  }
  func.func @transform_3(%arg0: i32) -> (i32, i32) {
    %c0_i32 = arith.constant 0 : i32
    %c0_i32_0 = arith.constant 0 : i32
    return %arg0, %c0_i32 : i32, i32
  }
  func.func @transform_4(%arg0: i32) -> (i32, i32) {
    %c0_i32 = arith.constant 0 : i32
    %c0_i32_0 = arith.constant 0 : i32
    %c0_i32_1 = arith.constant 0 : i32
    return %c0_i32, %c0_i32_0 : i32, i32
  }
  func.func @transform_5(%arg0: i32) -> (i32, i32) {
    %c0_i32 = arith.constant 0 : i32
    %c0_i32_0 = arith.constant 0 : i32
    %c0_i32_1 = arith.constant 0 : i32
    return %c0_i32, %c0_i32_0 : i32, i32
  }
  func.func @transform_6(%arg0: i32) -> (i32, i32) {
    %c0_i32 = arith.constant 0 : i32
    %c0_i32_0 = arith.constant 0 : i32
    return %arg0, %c0_i32 : i32, i32
  }
}

</mosaic_0001>

<llo_original>
// kernel: residual_block_forward.2
$region0: #{residual_block_forward.2}
  #allocation0 [shape = 'u32[]', space=smem, size = 0x4, offset = 0x4, fixed_abs, tag = 'smem constant byte address 0x4 - core index']
  #allocation1 [shape = 'u32[72,128]{1,0:T(1,128)}', space=vmem, size = 0x9000, scoped, tag = 'internal scratch']
  %s0 = inlined_call_operand.vmem [shape: bf16[512,36], index: 0, kind: input, shape index: {}]
  %s1 = inlined_call_operand.vmem [shape: bf16[36,128], index: 1, kind: input, shape index: {}]
  %s2 = inlined_call_operand.vmem [shape: f32[1,128], index: 2, kind: input, shape index: {}]
  %s3 = inlined_call_operand.vmem [shape: bf16[512,128], index: 3, kind: output, shape index: {}]
  %s4 = sld [smem:[#allocation0]]
  $region45: #{residual_block_forward.2} parent=0
    _
  %s6 = ssub.s32 1, %s4
  %s7 = scalar_select 0, %s6, %s4
  loop: start=0, step=1, limit=4
  $region2: #{residual_block_forward.2} parent=0 // loop_pre_header
    _
  $region3: #{residual_block_forward.2} parent=0 // loop_header
    %s9 = sphi 0, %s13
    %p10 = scmp.ge.s32.totalorder %s9, 4
    %s19 = sphi 0, %s21
    %s22 = sphi 0, %s19
    %s23 = sphi 0, %s22
    %s39 = sphi 0, %s23
    %s43 = sphi 0, %s43
    %s45 = sphi 0, %s43
    %s46 = sphi 0, %s45
    %s60 = sphi 0, %s46
    %s64 = sphi 0, %s64
    %s66 = sphi 0, %s64
    %s67 = sphi 0, %s66
    %s81 = sphi 0, %s67
    %s87 = sphi 0, %s89
    %s90 = sphi 0, %s87
    %s91 = sphi 0, %s90
    %s107 = sphi 0, %s91
  $region4: #{residual_block_forward.2} parent=0 // loop_header_branch
    %12 = sbr.rel (%p10) target = $region8
  $region5: #{residual_block_forward.2} parent=0 // loop_body
    %s14 = ssub.s32 %s9, 1
    %s15 = ssub.s32 %s9, 2
    %s16 = sadd.s32 %s9, 1
    %s17 = ssub.s32 %s9, %s16
    %p18 = scmp.eq.s32.totalorder %s17, 0
    %s20 = sadd.s32 %s19, 1
    %s21 = scalar_select %p18, %s19, %s20
    %p24 = pneg %p18
    %p25 = scmp.eq.s32.totalorder %s9, 1
    %p26 = por %p24, %p25
    %p27 = scmp.ne.s32.totalorder %s19, %s22
    %p28 = scmp.eq.s32.totalorder %s9, 0
    %p29 = por %p27, %p28
    %p30 = scmp.ne.s32.totalorder %s19, %s22
    %p31 = scmp.eq.s32.totalorder %s14, 1
    %p32 = por %p30, %p31
    %p33 = scmp.ne.s32.totalorder %s22, %s23
    %p34 = scmp.eq.s32.totalorder %s14, 0
    %p35 = por %p33, %p34
    %p36 = scmp.ne.s32.totalorder %s22, %s23
    %p37 = scmp.eq.s32.totalorder %s15, 1
    %p38 = por %p36, %p37
    %p40 = scmp.ne.s32.totalorder %s23, %s39
    %p41 = scmp.eq.s32.totalorder %s15, 0
    %p42 = por %p40, %p41
    %s44 = sadd.s32 %s43, 1
    %p47 = scmp.eq.s32.totalorder %s9, 1
    %p48 = scmp.ne.s32.totalorder %s43, %s45
    %p49 = scmp.eq.s32.totalorder %s9, 0
    %p50 = por %p48, %p49
    %p51 = scmp.ne.s32.totalorder %s43, %s45
    %p52 = scmp.eq.s32.totalorder %s14, 1
    %p53 = por %p51, %p52
    %p54 = scmp.ne.s32.totalorder %s45, %s46
    %p55 = scmp.eq.s32.totalorder %s14, 0
    %p56 = por %p54, %p55
    %p57 = scmp.ne.s32.totalorder %s45, %s46
    %p58 = scmp.eq.s32.totalorder %s15, 1
    %p59 = por %p57, %p58
    %p61 = scmp.ne.s32.totalorder %s46, %s60
    %p62 = scmp.eq.s32.totalorder %s15, 0
    %p63 = por %p61, %p62
    %s65 = sadd.s32 %s64, 1
    %p68 = scmp.eq.s32.totalorder %s9, 1
    %p69 = scmp.ne.s32.totalorder %s64, %s66
    %p70 = scmp.eq.s32.totalorder %s9, 0
    %p71 = por %p69, %p70
    %p72 = scmp.ne.s32.totalorder %s64, %s66
    %p73 = scmp.eq.s32.totalorder %s14, 1
    %p74 = por %p72, %p73
    %p75 = scmp.ne.s32.totalorder %s66, %s67
    %p76 = scmp.eq.s32.totalorder %s14, 0
    %p77 = por %p75, %p76
    %p78 = scmp.ne.s32.totalorder %s66, %s67
    %p79 = scmp.eq.s32.totalorder %s15, 1
    %p80 = por %p78, %p79
    %p82 = scmp.ne.s32.totalorder %s67, %s81
    %p83 = scmp.eq.s32.totalorder %s15, 0
    %p84 = por %p82, %p83
    %s85 = ssub.s32 %s9, %s16
    %p86 = scmp.eq.s32.totalorder %s85, 0
    %s88 = sadd.s32 %s87, 1
    %s89 = scalar_select %p86, %s87, %s88
    %p92 = pneg %p86
    %p93 = scmp.eq.s32.totalorder %s9, 1
    %p94 = por %p92, %p93
    %p95 = scmp.ne.s32.totalorder %s87, %s90
    %p96 = scmp.eq.s32.totalorder %s9, 0
    %p97 = por %p95, %p96
    %p98 = scmp.ne.s32.totalorder %s87, %s90
    %p99 = scmp.eq.s32.totalorder %s14, 1
    %p100 = por %p98, %p99
    %p101 = scmp.ne.s32.totalorder %s90, %s91
    %p102 = scmp.eq.s32.totalorder %s14, 0
    %p103 = por %p101, %p102
    %p104 = scmp.ne.s32.totalorder %s90, %s91
    %p105 = scmp.eq.s32.totalorder %s15, 1
    %p106 = por %p104, %p105
    %p108 = scmp.ne.s32.totalorder %s91, %s107
    %p109 = scmp.eq.s32.totalorder %s15, 0
    %p110 = por %p108, %p109
    %p111 = scmp.le.s32.totalorder 1, %s9
    %p112 = scmp.lt.s32.totalorder %s9, 3
    %p113 = pnand %p111, %p112
    %p114 = pneg %p113
    // Predicated region
    $region9: #{residual_block_forward.2} parent=5 // pred_check
      _
    $region10: #{residual_block_forward.2} parent=5 // pred_check_branch
      %116 = sbr.rel (%p113) target = $region12
    $region11: #{residual_block_forward.2} parent=5 // pred_region
      %s117 = ssub.s32 %s9, 1
      // Predicated region
      $region13: #{residual_block_forward.2} parent=11 // pred_check
        %p118 = pneg %p56
      $region14: #{residual_block_forward.2} parent=11 // pred_check_branch
        %120 = sbr.rel (%p118) target = $region16
      $region15: #{residual_block_forward.2} parent=11 // pred_region
        _
      $region16: #{residual_block_forward.2} parent=11 // pred_fallthru
        _
      // Predicated region
      $region17: #{residual_block_forward.2} parent=11 // pred_check
        %p121 = pneg %p77
      $region18: #{residual_block_forward.2} parent=11 // pred_check_branch
        %123 = sbr.rel (%p121) target = $region20
      $region19: #{residual_block_forward.2} parent=11 // pred_region
        _
      $region20: #{residual_block_forward.2} parent=11 // pred_fallthru
        _
    $region12: #{residual_block_forward.2} parent=5 // pred_fallthru
      _
    %p124 = scmp.lt.s32.totalorder %s9, 2
    // Predicated region
    $region21: #{residual_block_forward.2} parent=5 // pred_check
      %p125 = pneg %p124
    $region22: #{residual_block_forward.2} parent=5 // pred_check_branch
      %127 = sbr.rel (%p125) target = $region24
    $region23: #{residual_block_forward.2} parent=5 // pred_region
      // Predicated region
      $region25: #{residual_block_forward.2} parent=23 // pred_check
        %p128 = pneg %p29
      $region26: #{residual_block_forward.2} parent=23 // pred_check_branch
        %130 = sbr.rel (%p128) target = $region28
      $region27: #{residual_block_forward.2} parent=23 // pred_region
        %s131 = smul.u32 32, %s9
        %p132 = scmp.lt.s32.totalorder %s131, 63
        %s133 = scalar_select %p132, %s131, 63
        %s134 = smul.addr %s133, 4
        %s135 = scalar_lea.vmem %s0, %s134
        %s136 = smul.u32 32, %s9
      $region28: #{residual_block_forward.2} parent=23 // pred_fallthru
        _
    $region24: #{residual_block_forward.2} parent=5 // pred_fallthru
      _
    %p137 = scmp.le.s32.totalorder 1, %s9
    %p138 = scmp.lt.s32.totalorder %s9, 3
    %p139 = pnand %p137, %p138
    %p140 = pneg %p139
    // Predicated region
    $region29: #{residual_block_forward.2} parent=5 // pred_check
      _
    $region30: #{residual_block_forward.2} parent=5 // pred_check_branch
      %142 = sbr.rel (%p139) target = $region32
    $region31: #{residual_block_forward.2} parent=5 // pred_region
      %s143 = ssub.s32 %s9, 1
      %s144 = smul.u32 32, %s14
      %p145 = scmp.lt.s32.totalorder %s144, 63
      %s146 = scalar_select %p145, %s144, 63
      %s147 = smul.addr %s146, 4
      %s148 = scalar_lea.vmem %s0, %s147
      %p149 = pneg %p35
      %p150 = pneg %p32
      %p151 = pneg %p56
      %p152 = pneg %p53
      %p153 = pneg %p77
      %p154 = pneg %p74
      %p155 = pneg %p103
      %p156 = pneg %p100
      %s157 = smul.u32 32, %s14
      %p158 = scmp.lt.s32.totalorder %s157, 63
      %s159 = scalar_select %p158, %s157, 63
      %s160 = smul.addr %s159, 4
      %s161 = scalar_lea.vmem %s3, %s160
      %s162 = smul.u32 32, %s14
      %p163 = scmp.lt.s32.totalorder %s162, 63
      %s164 = scalar_select %p163, %s162, 63
      %s165 = smul.addr %s164, 4
      %s166 = scalar_lea.vmem %s0, %s165
      %s167 = smul.u32 32, %s14
      %s168 = smul.u32 32, %s14
      %p169 = scmp.lt.s32.totalorder %s168, 63
      %s170 = scalar_select %p169, %s168, 63
      %s171 = smul.addr %s170, 4
      %s172 = scalar_lea.vmem %s3, %s171
      %s173 = smul.u32 32, %s14
      %v175 = vld [vmem:[%s166] sm:$0xf]
      %v176 = vld [vmem:[%s166 + $0x4] sm:$0xf]
      %v177 = vld [vmem:[%s166 + $0x8] sm:$0xf]
      %v178 = vld [vmem:[%s166 + $0xc] sm:$0xf]
      %v179 = vld [vmem:[%s166 + $0x10] sm:$0xf]
      %v180 = vld [vmem:[%s166 + $0x14] sm:$0xf]
      %v181 = vld [vmem:[%s166 + $0x18] sm:$0xf]
      %v182 = vld [vmem:[%s166 + $0x1c] sm:$0xf]
      %v183 = vld [vmem:[%s166 + $0x20] sm:$0xf]
      %v184 = vld [vmem:[%s166 + $0x24] sm:$0xf]
      %v185 = vld [vmem:[%s166 + $0x28] sm:$0xf]
      %v186 = vld [vmem:[%s166 + $0x2c] sm:$0xf]
      %v187 = vld [vmem:[%s166 + $0x30] sm:$0xf]
      %v188 = vld [vmem:[%s166 + $0x34] sm:$0xf]
      %v189 = vld [vmem:[%s166 + $0x38] sm:$0xf]
      %v190 = vld [vmem:[%s166 + $0x3c] sm:$0xf]
      %v191 = vld [vmem:[%s166 + $0x40] sm:$0xf]
      %v192 = vld [vmem:[%s166 + $0x44] sm:$0xf]
      %v193 = vld [vmem:[%s166 + $0x48] sm:$0xf]
      %v194 = vld [vmem:[%s166 + $0x4c] sm:$0xf]
      %v195 = vld [vmem:[%s166 + $0x50] sm:$0xf]
      %v196 = vld [vmem:[%s166 + $0x54] sm:$0xf]
      %v197 = vld [vmem:[%s166 + $0x58] sm:$0xf]
      %v198 = vld [vmem:[%s166 + $0x5c] sm:$0xf]
      %v199 = vld [vmem:[%s166 + $0x60] sm:$0xf]
      %v200 = vld [vmem:[%s166 + $0x64] sm:$0xf]
      %v201 = vld [vmem:[%s166 + $0x68] sm:$0xf]
      %v202 = vld [vmem:[%s166 + $0x6c] sm:$0xf]
      %v203 = vld [vmem:[%s166 + $0x70] sm:$0xf]
      %v204 = vld [vmem:[%s166 + $0x74] sm:$0xf]
      %v205 = vld [vmem:[%s166 + $0x78] sm:$0xf]
      %v206 = vld [vmem:[%s166 + $0x7c] sm:$0xf]
      %v207 = vld [vmem:[%s1] sm:$0xf]
      %v208 = vld [vmem:[%s1 + $0x4] sm:$0xf]
      %v209 = vld [vmem:[%s1 + $0x8] sm:$0xf]
      %v210 = vld [vmem:[%s1 + $0xc] sm:$0xf]
      %v211 = vld [vmem:[%s1 + $0x10] sm:$0x3]
      %v212 = vld [vmem:[%s2] sm:$0x1]
      %v214 = vperm.slane %v212, 0
      %v248 = vunpack.c.l.b16 %v175
      %v249 = vunpack.c.l.b16 %v176
      %v250 = vunpack.c.l.b16 %v177
      %v251 = vunpack.c.l.b16 %v178
      %v252 = vunpack.c.l.b16 %v179
      %v253 = vunpack.c.l.b16 %v180
      %v254 = vunpack.c.l.b16 %v181
      %v255 = vunpack.c.l.b16 %v182
      %v256 = vunpack.c.l.b16 %v183
      %v257 = vunpack.c.l.b16 %v184
      %v258 = vunpack.c.l.b16 %v185
      %v259 = vunpack.c.l.b16 %v186
      %v260 = vunpack.c.l.b16 %v187
      %v261 = vunpack.c.l.b16 %v188
      %v262 = vunpack.c.l.b16 %v189
      %v263 = vunpack.c.l.b16 %v190
      %v264 = vunpack.c.l.b16 %v191
      %v265 = vunpack.c.l.b16 %v192
      %v266 = vunpack.c.l.b16 %v193
      %v267 = vunpack.c.l.b16 %v194
      %v268 = vunpack.c.l.b16 %v195
      %v269 = vunpack.c.l.b16 %v196
      %v270 = vunpack.c.l.b16 %v197
      %v271 = vunpack.c.l.b16 %v198
      %v272 = vunpack.c.l.b16 %v199
      %v273 = vunpack.c.l.b16 %v200
      %v274 = vunpack.c.l.b16 %v201
      %v275 = vunpack.c.l.b16 %v202
      %v276 = vunpack.c.l.b16 %v203
      %v277 = vunpack.c.l.b16 %v204
      %v278 = vunpack.c.l.b16 %v205
      %v279 = vunpack.c.l.b16 %v206
      %v280 = vpack.c.b16 %v249, %v248
      %v281 = vpack.c.b16 %v251, %v250
      %v282 = vpack.c.b16 %v253, %v252
      %v283 = vpack.c.b16 %v255, %v254
      %v284 = vpack.c.b16 %v257, %v256
      %v285 = vpack.c.b16 %v259, %v258
      %v286 = vpack.c.b16 %v261, %v260
      %v287 = vpack.c.b16 %v263, %v262
      %v288 = vpack.c.b16 %v265, %v264
      %v289 = vpack.c.b16 %v267, %v266
      %v290 = vpack.c.b16 %v269, %v268
      %v291 = vpack.c.b16 %v271, %v270
      %v292 = vpack.c.b16 %v273, %v272
      %v293 = vpack.c.b16 %v275, %v274
      %v294 = vpack.c.b16 %v277, %v276
      %v295 = vpack.c.b16 %v279, %v278
      %v301 = vunpack.c.l.b16 %v207
      %v302 = vunpack.c.l.b16 %v208
      %v303 = vunpack.c.l.b16 %v209
      %v304 = vunpack.c.l.b16 %v210
      %v305 = vunpack.c.l.b16 %v211
      %v306 = vpack.c.b16 %v302, %v301
      %v307 = vpack.c.b16 %v304, %v303
      %v308 = vpack.c.b16 %v305, %v305
      %vm311 = vcmask 293888
      %v313 = vsel %vm311, %v280, 0
      %v316 = vsel %vm311, %v281, 0
      %v319 = vsel %vm311, %v282, 0
      %v322 = vsel %vm311, %v283, 0
      %v325 = vsel %vm311, %v284, 0
      %v328 = vsel %vm311, %v285, 0
      %v331 = vsel %vm311, %v286, 0
      %v334 = vsel %vm311, %v287, 0
      %v337 = vsel %vm311, %v288, 0
      %v340 = vsel %vm311, %v289, 0
      %v343 = vsel %vm311, %v290, 0
      %v346 = vsel %vm311, %v291, 0
      %v349 = vsel %vm311, %v292, 0
      %v352 = vsel %vm311, %v293, 0
      %v355 = vsel %vm311, %v294, 0
      %v358 = vsel %vm311, %v295, 0
      %vm360 = vcmask 1041408
      %v362 = vsel %vm360, %v308, 0
      %364 = vmatpush.bf16.msra.mxu0 0
      %365 = vmatpush.bf16.msra.mxu0 0
      %366 = vmatpush.bf16.msra.mxu0 0
      %367 = vmatpush.bf16.msra.mxu0 0
      %368 = vmatpush.bf16.msra.mxu0 0
      %369 = vmatpush.bf16.msra.mxu0 %v362
      %370 = vmatpush.bf16.msra.mxu0 %v307
      %371 = vmatpush.bf16.msra.mxu0 %v306
      %372 = vmatmul.bf16.gmra.mxu0 %v313
      %v373 = vpop.f32.mrf.mxu0
      %v374 = vadd.f32 %v214, %v373
      %v375 = vpop.f32.mrf.mxu0
      %v376 = vadd.f32 %v214, %v375
      %377 = vmatmul.bf16.gmra.mxu0 %v316
      %v378 = vpop.f32.mrf.mxu0
      %v379 = vadd.f32 %v214, %v378
      %v380 = vpop.f32.mrf.mxu0
      %v381 = vadd.f32 %v214, %v380
      %382 = vmatmul.bf16.gmra.mxu0 %v319
      %v383 = vpop.f32.mrf.mxu0
      %v384 = vadd.f32 %v214, %v383
      %v385 = vpop.f32.mrf.mxu0
      %v386 = vadd.f32 %v214, %v385
      %387 = vmatmul.bf16.gmra.mxu0 %v322
      %v388 = vpop.f32.mrf.mxu0
      %v389 = vadd.f32 %v214, %v388
      %v390 = vpop.f32.mrf.mxu0
      %v391 = vadd.f32 %v214, %v390
      %392 = vmatmul.bf16.gmra.mxu0 %v325
      %v393 = vpop.f32.mrf.mxu0
      %v394 = vadd.f32 %v214, %v393
      %v395 = vpop.f32.mrf.mxu0
      %v396 = vadd.f32 %v214, %v395
      %397 = vmatmul.bf16.gmra.mxu0 %v328
      %v398 = vpop.f32.mrf.mxu0
      %v399 = vadd.f32 %v214, %v398
      %v400 = vpop.f32.mrf.mxu0
      %v401 = vadd.f32 %v214, %v400
      %402 = vmatmul.bf16.gmra.mxu0 %v331
      %v403 = vpop.f32.mrf.mxu0
      %v404 = vadd.f32 %v214, %v403
      %v405 = vpop.f32.mrf.mxu0
      %v406 = vadd.f32 %v214, %v405
      %407 = vmatmul.bf16.gmra.mxu0 %v334
      %v408 = vpop.f32.mrf.mxu0
      %v409 = vadd.f32 %v214, %v408
      %v410 = vpop.f32.mrf.mxu0
      %v411 = vadd.f32 %v214, %v410
      %412 = vmatmul.bf16.gmra.mxu0 %v337
      %v413 = vpop.f32.mrf.mxu0
      %v414 = vadd.f32 %v214, %v413
      %v415 = vpop.f32.mrf.mxu0
      %v416 = vadd.f32 %v214, %v415
      %417 = vmatmul.bf16.gmra.mxu0 %v340
      %v418 = vpop.f32.mrf.mxu0
      %v419 = vadd.f32 %v214, %v418
      %v420 = vpop.f32.mrf.mxu0
      %v421 = vadd.f32 %v214, %v420
      %422 = vmatmul.bf16.gmra.mxu0 %v343
      %v423 = vpop.f32.mrf.mxu0
      %v424 = vadd.f32 %v214, %v423
      %v425 = vpop.f32.mrf.mxu0
      %v426 = vadd.f32 %v214, %v425
      %427 = vmatmul.bf16.gmra.mxu0 %v346
      %v428 = vpop.f32.mrf.mxu0
      %v429 = vadd.f32 %v214, %v428
      %v430 = vpop.f32.mrf.mxu0
      %v431 = vadd.f32 %v214, %v430
      %432 = vmatmul.bf16.gmra.mxu0 %v349
      %v433 = vpop.f32.mrf.mxu0
      %v434 = vadd.f32 %v214, %v433
      %v435 = vpop.f32.mrf.mxu0
      %v436 = vadd.f32 %v214, %v435
      %437 = vmatmul.bf16.gmra.mxu0 %v352
      %v438 = vpop.f32.mrf.mxu0
      %v439 = vadd.f32 %v214, %v438
      %v440 = vpop.f32.mrf.mxu0
      %v441 = vadd.f32 %v214, %v440
      %442 = vmatmul.bf16.gmra.mxu0 %v355
      %v443 = vpop.f32.mrf.mxu0
      %v444 = vadd.f32 %v214, %v443
      %v445 = vpop.f32.mrf.mxu0
      %v446 = vadd.f32 %v214, %v445
      %447 = vmatmul.bf16.gmra.mxu0 %v358
      %v448 = vpop.f32.mrf.mxu0
      %v449 = vadd.f32 %v214, %v448
      %v450 = vpop.f32.mrf.mxu0
      %v451 = vadd.f32 %v214, %v450
      %452 = vdwg.mxu0
      %v453 = vmax.f32 %v374, 0.0
      %v454 = vmax.f32 %v376, 0.0
      %v455 = vmax.f32 %v379, 0.0
      %v456 = vmax.f32 %v381, 0.0
      %v457 = vmax.f32 %v384, 0.0
      %v458 = vmax.f32 %v386, 0.0
      %v459 = vmax.f32 %v389, 0.0
      %v460 = vmax.f32 %v391, 0.0
      %v461 = vmax.f32 %v394, 0.0
      %v462 = vmax.f32 %v396, 0.0
      %v463 = vmax.f32 %v399, 0.0
      %v464 = vmax.f32 %v401, 0.0
      %v465 = vmax.f32 %v404, 0.0
      %v466 = vmax.f32 %v406, 0.0
      %v467 = vmax.f32 %v409, 0.0
      %v468 = vmax.f32 %v411, 0.0
      %v469 = vmax.f32 %v414, 0.0
      %v470 = vmax.f32 %v416, 0.0
      %v471 = vmax.f32 %v419, 0.0
      %v472 = vmax.f32 %v421, 0.0
      %v473 = vmax.f32 %v424, 0.0
      %v474 = vmax.f32 %v426, 0.0
      %v475 = vmax.f32 %v429, 0.0
      %v476 = vmax.f32 %v431, 0.0
      %v477 = vmax.f32 %v434, 0.0
      %v478 = vmax.f32 %v436, 0.0
      %v479 = vmax.f32 %v439, 0.0
      %v480 = vmax.f32 %v441, 0.0
      %v481 = vmax.f32 %v444, 0.0
      %v482 = vmax.f32 %v446, 0.0
      %v483 = vmax.f32 %v449, 0.0
      %v484 = vmax.f32 %v451, 0.0
      %v485 = vpack.c.bf16 %v453, %v453
      %v486 = vpack.c.bf16 %v454, %v454
      %v487 = vpack.c.bf16 %v455, %v455
      %v488 = vpack.c.bf16 %v456, %v456
      %v489 = vpack.c.bf16 %v457, %v457
      %v490 = vpack.c.bf16 %v458, %v458
      %v491 = vpack.c.bf16 %v459, %v459
      %v492 = vpack.c.bf16 %v460, %v460
      %v493 = vpack.c.bf16 %v461, %v461
      %v494 = vpack.c.bf16 %v462, %v462
      %v495 = vpack.c.bf16 %v463, %v463
      %v496 = vpack.c.bf16 %v464, %v464
      %v497 = vpack.c.bf16 %v465, %v465
      %v498 = vpack.c.bf16 %v466, %v466
      %v499 = vpack.c.bf16 %v467, %v467
      %v500 = vpack.c.bf16 %v468, %v468
      %v501 = vpack.c.bf16 %v469, %v469
      %v502 = vpack.c.bf16 %v470, %v470
      %v503 = vpack.c.bf16 %v471, %v471
      %v504 = vpack.c.bf16 %v472, %v472
      %v505 = vpack.c.bf16 %v473, %v473
      %v506 = vpack.c.bf16 %v474, %v474
      %v507 = vpack.c.bf16 %v475, %v475
      %v508 = vpack.c.bf16 %v476, %v476
      %v509 = vpack.c.bf16 %v477, %v477
      %v510 = vpack.c.bf16 %v478, %v478
      %v511 = vpack.c.bf16 %v479, %v479
      %v512 = vpack.c.bf16 %v480, %v480
      %v513 = vpack.c.bf16 %v481, %v481
      %v514 = vpack.c.bf16 %v482, %v482
      %v515 = vpack.c.bf16 %v483, %v483
      %v516 = vpack.c.bf16 %v484, %v484
      %517 = vst [vmem:[%s172] sm:$0xf] %v485
      %518 = vst [vmem:[%s172 + $0x4] sm:$0xf] %v486
      %519 = vst [vmem:[%s172 + $0x8] sm:$0xf] %v487
      %520 = vst [vmem:[%s172 + $0xc] sm:$0xf] %v488
      %521 = vst [vmem:[%s172 + $0x10] sm:$0xf] %v489
      %522 = vst [vmem:[%s172 + $0x14] sm:$0xf] %v490
      %523 = vst [vmem:[%s172 + $0x18] sm:$0xf] %v491
      %524 = vst [vmem:[%s172 + $0x1c] sm:$0xf] %v492
      %525 = vst [vmem:[%s172 + $0x20] sm:$0xf] %v493
      %526 = vst [vmem:[%s172 + $0x24] sm:$0xf] %v494
      %527 = vst [vmem:[%s172 + $0x28] sm:$0xf] %v495
      %528 = vst [vmem:[%s172 + $0x2c] sm:$0xf] %v496
      %529 = vst [vmem:[%s172 + $0x30] sm:$0xf] %v497
      %530 = vst [vmem:[%s172 + $0x34] sm:$0xf] %v498
      %531 = vst [vmem:[%s172 + $0x38] sm:$0xf] %v499
      %532 = vst [vmem:[%s172 + $0x3c] sm:$0xf] %v500
      %533 = vst [vmem:[%s172 + $0x40] sm:$0xf] %v501
      %534 = vst [vmem:[%s172 + $0x44] sm:$0xf] %v502
      %535 = vst [vmem:[%s172 + $0x48] sm:$0xf] %v503
      %536 = vst [vmem:[%s172 + $0x4c] sm:$0xf] %v504
      %537 = vst [vmem:[%s172 + $0x50] sm:$0xf] %v505
      %538 = vst [vmem:[%s172 + $0x54] sm:$0xf] %v506
      %539 = vst [vmem:[%s172 + $0x58] sm:$0xf] %v507
      %540 = vst [vmem:[%s172 + $0x5c] sm:$0xf] %v508
      %541 = vst [vmem:[%s172 + $0x60] sm:$0xf] %v509
      %542 = vst [vmem:[%s172 + $0x64] sm:$0xf] %v510
      %543 = vst [vmem:[%s172 + $0x68] sm:$0xf] %v511
      %544 = vst [vmem:[%s172 + $0x6c] sm:$0xf] %v512
      %545 = vst [vmem:[%s172 + $0x70] sm:$0xf] %v513
      %546 = vst [vmem:[%s172 + $0x74] sm:$0xf] %v514
      %547 = vst [vmem:[%s172 + $0x78] sm:$0xf] %v515
      %548 = vst [vmem:[%s172 + $0x7c] sm:$0xf] %v516
      %s549 = smul.u32 32, %s14
      %p550 = scmp.lt.s32.totalorder %s549, 63
      %s551 = scalar_select %p550, %s549, 63
      %s552 = smul.addr %s551, 4
      %s553 = scalar_lea.vmem %s3, %s552
      // Predicated region
      $region33: #{residual_block_forward.2} parent=31 // pred_check
        %p554 = pneg %p100
      $region34: #{residual_block_forward.2} parent=31 // pred_check_branch
        %556 = sbr.rel (%p554) target = $region36
      $region35: #{residual_block_forward.2} parent=31 // pred_region
        %s557 = smul.u32 32, %s14
      $region36: #{residual_block_forward.2} parent=31 // pred_fallthru
        _
    $region32: #{residual_block_forward.2} parent=5 // pred_fallthru
      _
    %p558 = scmp.le.s32.totalorder 2, %s9
    // Predicated region
    $region37: #{residual_block_forward.2} parent=5 // pred_check
      %p559 = pneg %p558
    $region38: #{residual_block_forward.2} parent=5 // pred_check_branch
      %561 = sbr.rel (%p559) target = $region40
    $region39: #{residual_block_forward.2} parent=5 // pred_region
      %s562 = ssub.s32 %s9, 2
      // Predicated region
      $region41: #{residual_block_forward.2} parent=39 // pred_check
        %p563 = pneg %p106
      $region42: #{residual_block_forward.2} parent=39 // pred_check_branch
        %565 = sbr.rel (%p563) target = $region44
      $region43: #{residual_block_forward.2} parent=39 // pred_region
        %s566 = smul.u32 32, %s15
        %p567 = scmp.lt.s32.totalorder %s566, 63
        %s568 = scalar_select %p567, %s566, 63
        %s569 = smul.addr %s568, 4
        %s570 = scalar_lea.vmem %s3, %s569
      $region44: #{residual_block_forward.2} parent=39 // pred_fallthru
        _
    $region40: #{residual_block_forward.2} parent=5 // pred_fallthru
      _
  $region6: #{residual_block_forward.2} parent=0 // loop_footer
    %s13 = sadd.s32 1, %s9
  $region7: #{residual_block_forward.2} parent=0 // loop_footer_branch
    %8 = sbr.rel target = $region3
  $region8: #{residual_block_forward.2} parent=0 // loop_exit
    _

// kernel: residual_block_forward.3
$region0: #{residual_block_forward.3}
  #allocation0 [shape = 'u32[]', space=smem, size = 0x4, offset = 0x4, fixed_abs, tag = 'smem constant byte address 0x4 - core index']
  #allocation1 [shape = 'u32[72,128]{1,0:T(1,128)}', space=vmem, size = 0x9000, scoped, tag = 'internal scratch']
  %s0 = inlined_call_operand.vmem [shape: bf16[512,72], index: 0, kind: input, shape index: {}]
  %s1 = inlined_call_operand.vmem [shape: bf16[72,128], index: 1, kind: input, shape index: {}]
  %s2 = inlined_call_operand.vmem [shape: f32[1,128], index: 2, kind: input, shape index: {}]
  %s3 = inlined_call_operand.vmem [shape: bf16[512,4], index: 3, kind: input, shape index: {}]
  %s4 = inlined_call_operand.vmem [shape: bf16[4,128], index: 4, kind: input, shape index: {}]
  %s5 = inlined_call_operand.vmem [shape: f32[1,128], index: 5, kind: input, shape index: {}]
  %s6 = inlined_call_operand.vmem [shape: f32[512,128], index: 6, kind: output, shape index: {}]
  %s7 = sld [smem:[#allocation0]]
  $region57: #{residual_block_forward.3} parent=0
    _
  %s9 = ssub.s32 1, %s7
  %s10 = scalar_select 0, %s9, %s7
  loop: start=0, step=1, limit=4
  $region2: #{residual_block_forward.3} parent=0 // loop_pre_header
    _
  $region3: #{residual_block_forward.3} parent=0 // loop_header
    %s12 = sphi 0, %s16
    %p13 = scmp.ge.s32.totalorder %s12, 4
    %s22 = sphi 0, %s24
    %s25 = sphi 0, %s22
    %s26 = sphi 0, %s25
    %s42 = sphi 0, %s26
    %s46 = sphi 0, %s46
    %s48 = sphi 0, %s46
    %s49 = sphi 0, %s48
    %s63 = sphi 0, %s49
    %s67 = sphi 0, %s67
    %s69 = sphi 0, %s67
    %s70 = sphi 0, %s69
    %s84 = sphi 0, %s70
    %s90 = sphi 0, %s92
    %s93 = sphi 0, %s90
    %s94 = sphi 0, %s93
    %s110 = sphi 0, %s94
    %s114 = sphi 0, %s114
    %s116 = sphi 0, %s114
    %s117 = sphi 0, %s116
    %s131 = sphi 0, %s117
    %s135 = sphi 0, %s135
    %s137 = sphi 0, %s135
    %s138 = sphi 0, %s137
    %s152 = sphi 0, %s138
    %s158 = sphi 0, %s160
    %s161 = sphi 0, %s158
    %s162 = sphi 0, %s161
    %s178 = sphi 0, %s162
  $region4: #{residual_block_forward.3} parent=0 // loop_header_branch
    %15 = sbr.rel (%p13) target = $region8
  $region5: #{residual_block_forward.3} parent=0 // loop_body
    %s17 = ssub.s32 %s12, 1
    %s18 = ssub.s32 %s12, 2
    %s19 = sadd.s32 %s12, 1
    %s20 = ssub.s32 %s12, %s19
    %p21 = scmp.eq.s32.totalorder %s20, 0
    %s23 = sadd.s32 %s22, 1
    %s24 = scalar_select %p21, %s22, %s23
    %p27 = pneg %p21
    %p28 = scmp.eq.s32.totalorder %s12, 1
    %p29 = por %p27, %p28
    %p30 = scmp.ne.s32.totalorder %s22, %s25
    %p31 = scmp.eq.s32.totalorder %s12, 0
    %p32 = por %p30, %p31
    %p33 = scmp.ne.s32.totalorder %s22, %s25
    %p34 = scmp.eq.s32.totalorder %s17, 1
    %p35 = por %p33, %p34
    %p36 = scmp.ne.s32.totalorder %s25, %s26
    %p37 = scmp.eq.s32.totalorder %s17, 0
    %p38 = por %p36, %p37
    %p39 = scmp.ne.s32.totalorder %s25, %s26
    %p40 = scmp.eq.s32.totalorder %s18, 1
    %p41 = por %p39, %p40
    %p43 = scmp.ne.s32.totalorder %s26, %s42
    %p44 = scmp.eq.s32.totalorder %s18, 0
    %p45 = por %p43, %p44
    %s47 = sadd.s32 %s46, 1
    %p50 = scmp.eq.s32.totalorder %s12, 1
    %p51 = scmp.ne.s32.totalorder %s46, %s48
    %p52 = scmp.eq.s32.totalorder %s12, 0
    %p53 = por %p51, %p52
    %p54 = scmp.ne.s32.totalorder %s46, %s48
    %p55 = scmp.eq.s32.totalorder %s17, 1
    %p56 = por %p54, %p55
    %p57 = scmp.ne.s32.totalorder %s48, %s49
    %p58 = scmp.eq.s32.totalorder %s17, 0
    %p59 = por %p57, %p58
    %p60 = scmp.ne.s32.totalorder %s48, %s49
    %p61 = scmp.eq.s32.totalorder %s18, 1
    %p62 = por %p60, %p61
    %p64 = scmp.ne.s32.totalorder %s49, %s63
    %p65 = scmp.eq.s32.totalorder %s18, 0
    %p66 = por %p64, %p65
    %s68 = sadd.s32 %s67, 1
    %p71 = scmp.eq.s32.totalorder %s12, 1
    %p72 = scmp.ne.s32.totalorder %s67, %s69
    %p73 = scmp.eq.s32.totalorder %s12, 0
    %p74 = por %p72, %p73
    %p75 = scmp.ne.s32.totalorder %s67, %s69
    %p76 = scmp.eq.s32.totalorder %s17, 1
    %p77 = por %p75, %p76
    %p78 = scmp.ne.s32.totalorder %s69, %s70
    %p79 = scmp.eq.s32.totalorder %s17, 0
    %p80 = por %p78, %p79
    %p81 = scmp.ne.s32.totalorder %s69, %s70
    %p82 = scmp.eq.s32.totalorder %s18, 1
    %p83 = por %p81, %p82
    %p85 = scmp.ne.s32.totalorder %s70, %s84
    %p86 = scmp.eq.s32.totalorder %s18, 0
    %p87 = por %p85, %p86
    %s88 = ssub.s32 %s12, %s19
    %p89 = scmp.eq.s32.totalorder %s88, 0
    %s91 = sadd.s32 %s90, 1
    %s92 = scalar_select %p89, %s90, %s91
    %p95 = pneg %p89
    %p96 = scmp.eq.s32.totalorder %s12, 1
    %p97 = por %p95, %p96
    %p98 = scmp.ne.s32.totalorder %s90, %s93
    %p99 = scmp.eq.s32.totalorder %s12, 0
    %p100 = por %p98, %p99
    %p101 = scmp.ne.s32.totalorder %s90, %s93
    %p102 = scmp.eq.s32.totalorder %s17, 1
    %p103 = por %p101, %p102
    %p104 = scmp.ne.s32.totalorder %s93, %s94
    %p105 = scmp.eq.s32.totalorder %s17, 0
    %p106 = por %p104, %p105
    %p107 = scmp.ne.s32.totalorder %s93, %s94
    %p108 = scmp.eq.s32.totalorder %s18, 1
    %p109 = por %p107, %p108
    %p111 = scmp.ne.s32.totalorder %s94, %s110
    %p112 = scmp.eq.s32.totalorder %s18, 0
    %p113 = por %p111, %p112
    %s115 = sadd.s32 %s114, 1
    %p118 = scmp.eq.s32.totalorder %s12, 1
    %p119 = scmp.ne.s32.totalorder %s114, %s116
    %p120 = scmp.eq.s32.totalorder %s12, 0
    %p121 = por %p119, %p120
    %p122 = scmp.ne.s32.totalorder %s114, %s116
    %p123 = scmp.eq.s32.totalorder %s17, 1
    %p124 = por %p122, %p123
    %p125 = scmp.ne.s32.totalorder %s116, %s117
    %p126 = scmp.eq.s32.totalorder %s17, 0
    %p127 = por %p125, %p126
    %p128 = scmp.ne.s32.totalorder %s116, %s117
    %p129 = scmp.eq.s32.totalorder %s18, 1
    %p130 = por %p128, %p129
    %p132 = scmp.ne.s32.totalorder %s117, %s131
    %p133 = scmp.eq.s32.totalorder %s18, 0
    %p134 = por %p132, %p133
    %s136 = sadd.s32 %s135, 1
    %p139 = scmp.eq.s32.totalorder %s12, 1
    %p140 = scmp.ne.s32.totalorder %s135, %s137
    %p141 = scmp.eq.s32.totalorder %s12, 0
    %p142 = por %p140, %p141
    %p143 = scmp.ne.s32.totalorder %s135, %s137
    %p144 = scmp.eq.s32.totalorder %s17, 1
    %p145 = por %p143, %p144
    %p146 = scmp.ne.s32.totalorder %s137, %s138
    %p147 = scmp.eq.s32.totalorder %s17, 0
    %p148 = por %p146, %p147
    %p149 = scmp.ne.s32.totalorder %s137, %s138
    %p150 = scmp.eq.s32.totalorder %s18, 1
    %p151 = por %p149, %p150
    %p153 = scmp.ne.s32.totalorder %s138, %s152
    %p154 = scmp.eq.s32.totalorder %s18, 0
    %p155 = por %p153, %p154
    %s156 = ssub.s32 %s12, %s19
    %p157 = scmp.eq.s32.totalorder %s156, 0
    %s159 = sadd.s32 %s158, 1
    %s160 = scalar_select %p157, %s158, %s159
    %p163 = pneg %p157
    %p164 = scmp.eq.s32.totalorder %s12, 1
    %p165 = por %p163, %p164
    %p166 = scmp.ne.s32.totalorder %s158, %s161
    %p167 = scmp.eq.s32.totalorder %s12, 0
    %p168 = por %p166, %p167
    %p169 = scmp.ne.s32.totalorder %s158, %s161
    %p170 = scmp.eq.s32.totalorder %s17, 1
    %p171 = por %p169, %p170
    %p172 = scmp.ne.s32.totalorder %s161, %s162
    %p173 = scmp.eq.s32.totalorder %s17, 0
    %p174 = por %p172, %p173
    %p175 = scmp.ne.s32.totalorder %s161, %s162
    %p176 = scmp.eq.s32.totalorder %s18, 1
    %p177 = por %p175, %p176
    %p179 = scmp.ne.s32.totalorder %s162, %s178
    %p180 = scmp.eq.s32.totalorder %s18, 0
    %p181 = por %p179, %p180
    %p182 = scmp.le.s32.totalorder 1, %s12
    %p183 = scmp.lt.s32.totalorder %s12, 3
    %p184 = pnand %p182, %p183
    %p185 = pneg %p184
    // Predicated region
    $region9: #{residual_block_forward.3} parent=5 // pred_check
      _
    $region10: #{residual_block_forward.3} parent=5 // pred_check_branch
      %187 = sbr.rel (%p184) target = $region12
    $region11: #{residual_block_forward.3} parent=5 // pred_region
      %s188 = ssub.s32 %s12, 1
      // Predicated region
      $region13: #{residual_block_forward.3} parent=11 // pred_check
        %p189 = pneg %p59
      $region14: #{residual_block_forward.3} parent=11 // pred_check_branch
        %191 = sbr.rel (%p189) target = $region16
      $region15: #{residual_block_forward.3} parent=11 // pred_region
        _
      $region16: #{residual_block_forward.3} parent=11 // pred_fallthru
        _
      // Predicated region
      $region17: #{residual_block_forward.3} parent=11 // pred_check
        %p192 = pneg %p80
      $region18: #{residual_block_forward.3} parent=11 // pred_check_branch
        %194 = sbr.rel (%p192) target = $region20
      $region19: #{residual_block_forward.3} parent=11 // pred_region
        _
      $region20: #{residual_block_forward.3} parent=11 // pred_fallthru
        _
      // Predicated region
      $region21: #{residual_block_forward.3} parent=11 // pred_check
        %p195 = pneg %p127
      $region22: #{residual_block_forward.3} parent=11 // pred_check_branch
        %197 = sbr.rel (%p195) target = $region24
      $region23: #{residual_block_forward.3} parent=11 // pred_region
        _
      $region24: #{residual_block_forward.3} parent=11 // pred_fallthru
        _
      // Predicated region
      $region25: #{residual_block_forward.3} parent=11 // pred_check
        %p198 = pneg %p148
      $region26: #{residual_block_forward.3} parent=11 // pred_check_branch
        %200 = sbr.rel (%p198) target = $region28
      $region27: #{residual_block_forward.3} parent=11 // pred_region
        _
      $region28: #{residual_block_forward.3} parent=11 // pred_fallthru
        _
    $region12: #{residual_block_forward.3} parent=5 // pred_fallthru
      _
    %p201 = scmp.lt.s32.totalorder %s12, 2
    // Predicated region
    $region29: #{residual_block_forward.3} parent=5 // pred_check
      %p202 = pneg %p201
    $region30: #{residual_block_forward.3} parent=5 // pred_check_branch
      %204 = sbr.rel (%p202) target = $region32
    $region31: #{residual_block_forward.3} parent=5 // pred_region
      // Predicated region
      $region33: #{residual_block_forward.3} parent=31 // pred_check
        %p205 = pneg %p32
      $region34: #{residual_block_forward.3} parent=31 // pred_check_branch
        %207 = sbr.rel (%p205) target = $region36
      $region35: #{residual_block_forward.3} parent=31 // pred_region
        %s208 = smul.u32 32, %s12
        %p209 = scmp.lt.s32.totalorder %s208, 63
        %s210 = scalar_select %p209, %s208, 63
        %s211 = smul.addr %s210, 4
        %s212 = scalar_lea.vmem %s0, %s211
        %s213 = smul.u32 32, %s12
      $region36: #{residual_block_forward.3} parent=31 // pred_fallthru
        _
      // Predicated region
      $region37: #{residual_block_forward.3} parent=31 // pred_check
        %p214 = pneg %p100
      $region38: #{residual_block_forward.3} parent=31 // pred_check_branch
        %216 = sbr.rel (%p214) target = $region40
      $region39: #{residual_block_forward.3} parent=31 // pred_region
        %s217 = smul.u32 32, %s12
        %p218 = scmp.lt.s32.totalorder %s217, 63
        %s219 = scalar_select %p218, %s217, 63
        %s220 = smul.addr %s219, 4
        %s221 = scalar_lea.vmem %s3, %s220
        %s222 = smul.u32 32, %s12
      $region40: #{residual_block_forward.3} parent=31 // pred_fallthru
        _
    $region32: #{residual_block_forward.3} parent=5 // pred_fallthru
      _
    %p223 = scmp.le.s32.totalorder 1, %s12
    %p224 = scmp.lt.s32.totalorder %s12, 3
    %p225 = pnand %p223, %p224
    %p226 = pneg %p225
    // Predicated region
    $region41: #{residual_block_forward.3} parent=5 // pred_check
      _
    $region42: #{residual_block_forward.3} parent=5 // pred_check_branch
      %228 = sbr.rel (%p225) target = $region44
    $region43: #{residual_block_forward.3} parent=5 // pred_region
      %s229 = ssub.s32 %s12, 1
      %s230 = smul.u32 32, %s17
      %p231 = scmp.lt.s32.totalorder %s230, 63
      %s232 = scalar_select %p231, %s230, 63
      %s233 = smul.addr %s232, 4
      %s234 = scalar_lea.vmem %s0, %s233
      %p235 = pneg %p38
      %p236 = pneg %p35
      %p237 = pneg %p59
      %p238 = pneg %p56
      %p239 = pneg %p80
      %p240 = pneg %p77
      %s241 = smul.u32 32, %s17
      %p242 = scmp.lt.s32.totalorder %s241, 63
      %s243 = scalar_select %p242, %s241, 63
      %s244 = smul.addr %s243, 4
      %s245 = scalar_lea.vmem %s3, %s244
      %p246 = pneg %p106
      %p247 = pneg %p103
      %p248 = pneg %p127
      %p249 = pneg %p124
      %p250 = pneg %p148
      %p251 = pneg %p145
      %p252 = pneg %p174
      %p253 = pneg %p171
      %s254 = smul.u32 32, %s17
      %p255 = scmp.lt.s32.totalorder %s254, 63
      %s256 = scalar_select %p255, %s254, 63
      %s257 = smul.addr %s256, 8
      %s258 = scalar_lea.vmem %s6, %s257
      %s259 = smul.u32 32, %s17
      %p260 = scmp.lt.s32.totalorder %s259, 63
      %s261 = scalar_select %p260, %s259, 63
      %s262 = smul.addr %s261, 4
      %s263 = scalar_lea.vmem %s0, %s262
      %s264 = smul.u32 32, %s17
      %s265 = smul.u32 32, %s17
      %p266 = scmp.lt.s32.totalorder %s265, 63
      %s267 = scalar_select %p266, %s265, 63
      %s268 = smul.addr %s267, 4
      %s269 = scalar_lea.vmem %s3, %s268
      %s270 = smul.u32 32, %s17
      %s271 = smul.u32 32, %s17
      %p272 = scmp.lt.s32.totalorder %s271, 63
      %s273 = scalar_select %p272, %s271, 63
      %s274 = smul.addr %s273, 8
      %s275 = scalar_lea.vmem %s6, %s274
      %s276 = smul.u32 32, %s17
      %v278 = vld [vmem:[%s263] sm:$0xf]
      %v279 = vld [vmem:[%s263 + $0x4] sm:$0xf]
      %v280 = vld [vmem:[%s263 + $0x8] sm:$0xf]
      %v281 = vld [vmem:[%s263 + $0xc] sm:$0xf]
      %v282 = vld [vmem:[%s263 + $0x10] sm:$0xf]
      %v283 = vld [vmem:[%s263 + $0x14] sm:$0xf]
      %v284 = vld [vmem:[%s263 + $0x18] sm:$0xf]
      %v285 = vld [vmem:[%s263 + $0x1c] sm:$0xf]
      %v286 = vld [vmem:[%s263 + $0x20] sm:$0xf]
      %v287 = vld [vmem:[%s263 + $0x24] sm:$0xf]
      %v288 = vld [vmem:[%s263 + $0x28] sm:$0xf]
      %v289 = vld [vmem:[%s263 + $0x2c] sm:$0xf]
      %v290 = vld [vmem:[%s263 + $0x30] sm:$0xf]
      %v291 = vld [vmem:[%s263 + $0x34] sm:$0xf]
      %v292 = vld [vmem:[%s263 + $0x38] sm:$0xf]
      %v293 = vld [vmem:[%s263 + $0x3c] sm:$0xf]
      %v294 = vld [vmem:[%s263 + $0x40] sm:$0xf]
      %v295 = vld [vmem:[%s263 + $0x44] sm:$0xf]
      %v296 = vld [vmem:[%s263 + $0x48] sm:$0xf]
      %v297 = vld [vmem:[%s263 + $0x4c] sm:$0xf]
      %v298 = vld [vmem:[%s263 + $0x50] sm:$0xf]
      %v299 = vld [vmem:[%s263 + $0x54] sm:$0xf]
      %v300 = vld [vmem:[%s263 + $0x58] sm:$0xf]
      %v301 = vld [vmem:[%s263 + $0x5c] sm:$0xf]
      %v302 = vld [vmem:[%s263 + $0x60] sm:$0xf]
      %v303 = vld [vmem:[%s263 + $0x64] sm:$0xf]
      %v304 = vld [vmem:[%s263 + $0x68] sm:$0xf]
      %v305 = vld [vmem:[%s263 + $0x6c] sm:$0xf]
      %v306 = vld [vmem:[%s263 + $0x70] sm:$0xf]
      %v307 = vld [vmem:[%s263 + $0x74] sm:$0xf]
      %v308 = vld [vmem:[%s263 + $0x78] sm:$0xf]
      %v309 = vld [vmem:[%s263 + $0x7c] sm:$0xf]
      %v310 = vld [vmem:[%s1] sm:$0xf]
      %v311 = vld [vmem:[%s1 + $0x4] sm:$0xf]
      %v312 = vld [vmem:[%s1 + $0x8] sm:$0xf]
      %v313 = vld [vmem:[%s1 + $0xc] sm:$0xf]
      %v314 = vld [vmem:[%s1 + $0x10] sm:$0xf]
      %v315 = vld [vmem:[%s1 + $0x14] sm:$0xf]
      %v316 = vld [vmem:[%s1 + $0x18] sm:$0xf]
      %v317 = vld [vmem:[%s1 + $0x1c] sm:$0xf]
      %v318 = vld [vmem:[%s1 + $0x20] sm:$0xf]
      %v319 = vld [vmem:[%s2] sm:$0x1]
      %v321 = vperm.slane %v319, 0
      %v355 = vunpack.c.l.b16 %v278
      %v356 = vunpack.c.l.b16 %v279
      %v357 = vunpack.c.l.b16 %v280
      %v358 = vunpack.c.l.b16 %v281
      %v359 = vunpack.c.l.b16 %v282
      %v360 = vunpack.c.l.b16 %v283
      %v361 = vunpack.c.l.b16 %v284
      %v362 = vunpack.c.l.b16 %v285
      %v363 = vunpack.c.l.b16 %v286
      %v364 = vunpack.c.l.b16 %v287
      %v365 = vunpack.c.l.b16 %v288
      %v366 = vunpack.c.l.b16 %v289
      %v367 = vunpack.c.l.b16 %v290
      %v368 = vunpack.c.l.b16 %v291
      %v369 = vunpack.c.l.b16 %v292
      %v370 = vunpack.c.l.b16 %v293
      %v371 = vunpack.c.l.b16 %v294
      %v372 = vunpack.c.l.b16 %v295
      %v373 = vunpack.c.l.b16 %v296
      %v374 = vunpack.c.l.b16 %v297
      %v375 = vunpack.c.l.b16 %v298
      %v376 = vunpack.c.l.b16 %v299
      %v377 = vunpack.c.l.b16 %v300
      %v378 = vunpack.c.l.b16 %v301
      %v379 = vunpack.c.l.b16 %v302
      %v380 = vunpack.c.l.b16 %v303
      %v381 = vunpack.c.l.b16 %v304
      %v382 = vunpack.c.l.b16 %v305
      %v383 = vunpack.c.l.b16 %v306
      %v384 = vunpack.c.l.b16 %v307
      %v385 = vunpack.c.l.b16 %v308
      %v386 = vunpack.c.l.b16 %v309
      %v387 = vpack.c.b16 %v356, %v355
      %v388 = vpack.c.b16 %v358, %v357
      %v389 = vpack.c.b16 %v360, %v359
      %v390 = vpack.c.b16 %v362, %v361
      %v391 = vpack.c.b16 %v364, %v363
      %v392 = vpack.c.b16 %v366, %v365
      %v393 = vpack.c.b16 %v368, %v367
      %v394 = vpack.c.b16 %v370, %v369
      %v395 = vpack.c.b16 %v372, %v371
      %v396 = vpack.c.b16 %v374, %v373
      %v397 = vpack.c.b16 %v376, %v375
      %v398 = vpack.c.b16 %v378, %v377
      %v399 = vpack.c.b16 %v380, %v379
      %v400 = vpack.c.b16 %v382, %v381
      %v401 = vpack.c.b16 %v384, %v383
      %v402 = vpack.c.b16 %v386, %v385
      %v412 = vunpack.c.l.b16 %v310
      %v413 = vunpack.c.l.b16 %v311
      %v414 = vunpack.c.l.b16 %v312
      %v415 = vunpack.c.l.b16 %v313
      %v416 = vunpack.c.l.b16 %v314
      %v417 = vunpack.c.l.b16 %v315
      %v418 = vunpack.c.l.b16 %v316
      %v419 = vunpack.c.l.b16 %v317
      %v420 = vunpack.c.l.b16 %v318
      %v421 = vpack.c.b16 %v413, %v412
      %v422 = vpack.c.b16 %v415, %v414
      %v423 = vpack.c.b16 %v417, %v416
      %v424 = vpack.c.b16 %v419, %v418
      %v425 = vpack.c.b16 %v420, %v420
      %vm430 = vcmask 588800
      %v432 = vsel %vm430, %v387, 0
      %v435 = vsel %vm430, %v388, 0
      %v438 = vsel %vm430, %v389, 0
      %v441 = vsel %vm430, %v390, 0
      %v444 = vsel %vm430, %v391, 0
      %v447 = vsel %vm430, %v392, 0
      %v450 = vsel %vm430, %v393, 0
      %v453 = vsel %vm430, %v394, 0
      %v456 = vsel %vm430, %v395, 0
      %v459 = vsel %vm430, %v396, 0
      %v462 = vsel %vm430, %v397, 0
      %v465 = vsel %vm430, %v398, 0
      %v468 = vsel %vm430, %v399, 0
      %v471 = vsel %vm430, %v400, 0
      %v474 = vsel %vm430, %v401, 0
      %v477 = vsel %vm430, %v402, 0
      %vm479 = vcmask 1043456
      %v481 = vsel %vm479, %v425, 0
      %483 = vmatpush.bf16.msra.mxu0 0
      %484 = vmatpush.bf16.msra.mxu0 0
      %485 = vmatpush.bf16.msra.mxu0 0
      %486 = vmatpush.bf16.msra.mxu0 %v481
      %487 = vmatpush.bf16.msra.mxu0 %v424
      %488 = vmatpush.bf16.msra.mxu0 %v423
      %489 = vmatpush.bf16.msra.mxu0 %v422
      %490 = vmatpush.bf16.msra.mxu0 %v421
      %491 = vmatmul.bf16.gmra.mxu0 %v432
      %v492 = vpop.f32.mrf.mxu0
      %v493 = vadd.f32 %v321, %v492
      %v494 = vpop.f32.mrf.mxu0
      %v495 = vadd.f32 %v321, %v494
      %496 = vmatmul.bf16.gmra.mxu0 %v435
      %v497 = vpop.f32.mrf.mxu0
      %v498 = vadd.f32 %v321, %v497
      %v499 = vpop.f32.mrf.mxu0
      %v500 = vadd.f32 %v321, %v499
      %501 = vmatmul.bf16.gmra.mxu0 %v438
      %v502 = vpop.f32.mrf.mxu0
      %v503 = vadd.f32 %v321, %v502
      %v504 = vpop.f32.mrf.mxu0
      %v505 = vadd.f32 %v321, %v504
      %506 = vmatmul.bf16.gmra.mxu0 %v441
      %v507 = vpop.f32.mrf.mxu0
      %v508 = vadd.f32 %v321, %v507
      %v509 = vpop.f32.mrf.mxu0
      %v510 = vadd.f32 %v321, %v509
      %511 = vmatmul.bf16.gmra.mxu0 %v444
      %v512 = vpop.f32.mrf.mxu0
      %v513 = vadd.f32 %v321, %v512
      %v514 = vpop.f32.mrf.mxu0
      %v515 = vadd.f32 %v321, %v514
      %516 = vmatmul.bf16.gmra.mxu0 %v447
      %v517 = vpop.f32.mrf.mxu0
      %v518 = vadd.f32 %v321, %v517
      %v519 = vpop.f32.mrf.mxu0
      %v520 = vadd.f32 %v321, %v519
      %521 = vmatmul.bf16.gmra.mxu0 %v450
      %v522 = vpop.f32.mrf.mxu0
      %v523 = vadd.f32 %v321, %v522
      %v524 = vpop.f32.mrf.mxu0
      %v525 = vadd.f32 %v321, %v524
      %526 = vmatmul.bf16.gmra.mxu0 %v453
      %v527 = vpop.f32.mrf.mxu0
      %v528 = vadd.f32 %v321, %v527
      %v529 = vpop.f32.mrf.mxu0
      %v530 = vadd.f32 %v321, %v529
      %531 = vmatmul.bf16.gmra.mxu0 %v456
      %v532 = vpop.f32.mrf.mxu0
      %v533 = vadd.f32 %v321, %v532
      %v534 = vpop.f32.mrf.mxu0
      %v535 = vadd.f32 %v321, %v534
      %536 = vmatmul.bf16.gmra.mxu0 %v459
      %v537 = vpop.f32.mrf.mxu0
      %v538 = vadd.f32 %v321, %v537
      %v539 = vpop.f32.mrf.mxu0
      %v540 = vadd.f32 %v321, %v539
      %541 = vmatmul.bf16.gmra.mxu0 %v462
      %v542 = vpop.f32.mrf.mxu0
      %v543 = vadd.f32 %v321, %v542
      %v544 = vpop.f32.mrf.mxu0
      %v545 = vadd.f32 %v321, %v544
      %546 = vmatmul.bf16.gmra.mxu0 %v465
      %v547 = vpop.f32.mrf.mxu0
      %v548 = vadd.f32 %v321, %v547
      %v549 = vpop.f32.mrf.mxu0
      %v550 = vadd.f32 %v321, %v549
      %551 = vmatmul.bf16.gmra.mxu0 %v468
      %v552 = vpop.f32.mrf.mxu0
      %v553 = vadd.f32 %v321, %v552
      %v554 = vpop.f32.mrf.mxu0
      %v555 = vadd.f32 %v321, %v554
      %556 = vmatmul.bf16.gmra.mxu0 %v471
      %v557 = vpop.f32.mrf.mxu0
      %v558 = vadd.f32 %v321, %v557
      %v559 = vpop.f32.mrf.mxu0
      %v560 = vadd.f32 %v321, %v559
      %561 = vmatmul.bf16.gmra.mxu0 %v474
      %v562 = vpop.f32.mrf.mxu0
      %v563 = vadd.f32 %v321, %v562
      %v564 = vpop.f32.mrf.mxu0
      %v565 = vadd.f32 %v321, %v564
      %566 = vmatmul.bf16.gmra.mxu0 %v477
      %v567 = vpop.f32.mrf.mxu0
      %v568 = vadd.f32 %v321, %v567
      %v569 = vpop.f32.mrf.mxu0
      %v570 = vadd.f32 %v321, %v569
      %571 = vdwg.mxu0
      %v572 = vld [vmem:[%s269] sm:$0xf]
      %v573 = vld [vmem:[%s269 + $0x4] sm:$0xf]
      %v574 = vld [vmem:[%s269 + $0x8] sm:$0xf]
      %v575 = vld [vmem:[%s269 + $0xc] sm:$0xf]
      %v576 = vld [vmem:[%s269 + $0x10] sm:$0xf]
      %v577 = vld [vmem:[%s269 + $0x14] sm:$0xf]
      %v578 = vld [vmem:[%s269 + $0x18] sm:$0xf]
      %v579 = vld [vmem:[%s269 + $0x1c] sm:$0xf]
      %v580 = vld [vmem:[%s269 + $0x20] sm:$0xf]
      %v581 = vld [vmem:[%s269 + $0x24] sm:$0xf]
      %v582 = vld [vmem:[%s269 + $0x28] sm:$0xf]
      %v583 = vld [vmem:[%s269 + $0x2c] sm:$0xf]
      %v584 = vld [vmem:[%s269 + $0x30] sm:$0xf]
      %v585 = vld [vmem:[%s269 + $0x34] sm:$0xf]
      %v586 = vld [vmem:[%s269 + $0x38] sm:$0xf]
      %v587 = vld [vmem:[%s269 + $0x3c] sm:$0xf]
      %v588 = vld [vmem:[%s269 + $0x40] sm:$0xf]
      %v589 = vld [vmem:[%s269 + $0x44] sm:$0xf]
      %v590 = vld [vmem:[%s269 + $0x48] sm:$0xf]
      %v591 = vld [vmem:[%s269 + $0x4c] sm:$0xf]
      %v592 = vld [vmem:[%s269 + $0x50] sm:$0xf]
      %v593 = vld [vmem:[%s269 + $0x54] sm:$0xf]
      %v594 = vld [vmem:[%s269 + $0x58] sm:$0xf]
      %v595 = vld [vmem:[%s269 + $0x5c] sm:$0xf]
      %v596 = vld [vmem:[%s269 + $0x60] sm:$0xf]
      %v597 = vld [vmem:[%s269 + $0x64] sm:$0xf]
      %v598 = vld [vmem:[%s269 + $0x68] sm:$0xf]
      %v599 = vld [vmem:[%s269 + $0x6c] sm:$0xf]
      %v600 = vld [vmem:[%s269 + $0x70] sm:$0xf]
      %v601 = vld [vmem:[%s269 + $0x74] sm:$0xf]
      %v602 = vld [vmem:[%s269 + $0x78] sm:$0xf]
      %v603 = vld [vmem:[%s269 + $0x7c] sm:$0xf]
      %v604 = vld [vmem:[%s4] sm:$0x3]
      %v637 = vunpack.c.l.b16 %v572
      %v638 = vunpack.c.l.b16 %v573
      %v639 = vunpack.c.l.b16 %v574
      %v640 = vunpack.c.l.b16 %v575
      %v641 = vunpack.c.l.b16 %v576
      %v642 = vunpack.c.l.b16 %v577
      %v643 = vunpack.c.l.b16 %v578
      %v644 = vunpack.c.l.b16 %v579
      %v645 = vunpack.c.l.b16 %v580
      %v646 = vunpack.c.l.b16 %v581
      %v647 = vunpack.c.l.b16 %v582
      %v648 = vunpack.c.l.b16 %v583
      %v649 = vunpack.c.l.b16 %v584
      %v650 = vunpack.c.l.b16 %v585
      %v651 = vunpack.c.l.b16 %v586
      %v652 = vunpack.c.l.b16 %v587
      %v653 = vunpack.c.l.b16 %v588
      %v654 = vunpack.c.l.b16 %v589
      %v655 = vunpack.c.l.b16 %v590
      %v656 = vunpack.c.l.b16 %v591
      %v657 = vunpack.c.l.b16 %v592
      %v658 = vunpack.c.l.b16 %v593
      %v659 = vunpack.c.l.b16 %v594
      %v660 = vunpack.c.l.b16 %v595
      %v661 = vunpack.c.l.b16 %v596
      %v662 = vunpack.c.l.b16 %v597
      %v663 = vunpack.c.l.b16 %v598
      %v664 = vunpack.c.l.b16 %v599
      %v665 = vunpack.c.l.b16 %v600
      %v666 = vunpack.c.l.b16 %v601
      %v667 = vunpack.c.l.b16 %v602
      %v668 = vunpack.c.l.b16 %v603
      %v669 = vpack.c.b16 %v638, %v637
      %v670 = vpack.c.b16 %v640, %v639
      %v671 = vpack.c.b16 %v642, %v641
      %v672 = vpack.c.b16 %v644, %v643
      %v673 = vpack.c.b16 %v646, %v645
      %v674 = vpack.c.b16 %v648, %v647
      %v675 = vpack.c.b16 %v650, %v649
      %v676 = vpack.c.b16 %v652, %v651
      %v677 = vpack.c.b16 %v654, %v653
      %v678 = vpack.c.b16 %v656, %v655
      %v679 = vpack.c.b16 %v658, %v657
      %v680 = vpack.c.b16 %v660, %v659
      %v681 = vpack.c.b16 %v662, %v661
      %v682 = vpack.c.b16 %v664, %v663
      %v683 = vpack.c.b16 %v666, %v665
      %v684 = vpack.c.b16 %v668, %v667
      %vm685 = vcmask 31744
      %v687 = vsel %vm685, %v669, 0
      %v690 = vsel %vm685, %v670, 0
      %v693 = vsel %vm685, %v671, 0
      %v696 = vsel %vm685, %v672, 0
      %v699 = vsel %vm685, %v673, 0
      %v702 = vsel %vm685, %v674, 0
      %v705 = vsel %vm685, %v675, 0
      %v708 = vsel %vm685, %v676, 0
      %v711 = vsel %vm685, %v677, 0
      %v714 = vsel %vm685, %v678, 0
      %v717 = vsel %vm685, %v679, 0
      %v720 = vsel %vm685, %v680, 0
      %v723 = vsel %vm685, %v681, 0
      %v726 = vsel %vm685, %v682, 0
      %v729 = vsel %vm685, %v683, 0
      %v732 = vsel %vm685, %v684, 0
      %vm734 = vcmask 1041408
      %v736 = vsel %vm734, %v604, 0
      %738 = vmatpush.bf16.msra.mxu0 0
      %739 = vmatpush.bf16.msra.mxu0 0
      %740 = vmatpush.bf16.msra.mxu0 0
      %741 = vmatpush.bf16.msra.mxu0 0
      %742 = vmatpush.bf16.msra.mxu0 0
      %743 = vmatpush.bf16.msra.mxu0 0
      %744 = vmatpush.bf16.msra.mxu0 0
      %745 = vmatpush.bf16.msra.mxu0 %v736
      %746 = vmatmul.bf16.gmra.mxu0 %v687
      %v747 = vpop.f32.mrf.mxu0
      %v748 = vadd.f32 0.0, %v747
      %v749 = vpop.f32.mrf.mxu0
      %v750 = vadd.f32 0.0, %v749
      %751 = vmatmul.bf16.gmra.mxu0 %v690
      %v752 = vpop.f32.mrf.mxu0
      %v753 = vadd.f32 0.0, %v752
      %v754 = vpop.f32.mrf.mxu0
      %v755 = vadd.f32 0.0, %v754
      %756 = vmatmul.bf16.gmra.mxu0 %v693
      %v757 = vpop.f32.mrf.mxu0
      %v758 = vadd.f32 0.0, %v757
      %v759 = vpop.f32.mrf.mxu0
      %v760 = vadd.f32 0.0, %v759
      %761 = vmatmul.bf16.gmra.mxu0 %v696
      %v762 = vpop.f32.mrf.mxu0
      %v763 = vadd.f32 0.0, %v762
      %v764 = vpop.f32.mrf.mxu0
      %v765 = vadd.f32 0.0, %v764
      %766 = vmatmul.bf16.gmra.mxu0 %v699
      %v767 = vpop.f32.mrf.mxu0
      %v768 = vadd.f32 0.0, %v767
      %v769 = vpop.f32.mrf.mxu0
      %v770 = vadd.f32 0.0, %v769
      %771 = vmatmul.bf16.gmra.mxu0 %v702
      %v772 = vpop.f32.mrf.mxu0
      %v773 = vadd.f32 0.0, %v772
      %v774 = vpop.f32.mrf.mxu0
      %v775 = vadd.f32 0.0, %v774
      %776 = vmatmul.bf16.gmra.mxu0 %v705
      %v777 = vpop.f32.mrf.mxu0
      %v778 = vadd.f32 0.0, %v777
      %v779 = vpop.f32.mrf.mxu0
      %v780 = vadd.f32 0.0, %v779
      %781 = vmatmul.bf16.gmra.mxu0 %v708
      %v782 = vpop.f32.mrf.mxu0
      %v783 = vadd.f32 0.0, %v782
      %v784 = vpop.f32.mrf.mxu0
      %v785 = vadd.f32 0.0, %v784
      %786 = vmatmul.bf16.gmra.mxu0 %v711
      %v787 = vpop.f32.mrf.mxu0
      %v788 = vadd.f32 0.0, %v787
      %v789 = vpop.f32.mrf.mxu0
      %v790 = vadd.f32 0.0, %v789
      %791 = vmatmul.bf16.gmra.mxu0 %v714
      %v792 = vpop.f32.mrf.mxu0
      %v793 = vadd.f32 0.0, %v792
      %v794 = vpop.f32.mrf.mxu0
      %v795 = vadd.f32 0.0, %v794
      %796 = vmatmul.bf16.gmra.mxu0 %v717
      %v797 = vpop.f32.mrf.mxu0
      %v798 = vadd.f32 0.0, %v797
      %v799 = vpop.f32.mrf.mxu0
      %v800 = vadd.f32 0.0, %v799
      %801 = vmatmul.bf16.gmra.mxu0 %v720
      %v802 = vpop.f32.mrf.mxu0
      %v803 = vadd.f32 0.0, %v802
      %v804 = vpop.f32.mrf.mxu0
      %v805 = vadd.f32 0.0, %v804
      %806 = vmatmul.bf16.gmra.mxu0 %v723
      %v807 = vpop.f32.mrf.mxu0
      %v808 = vadd.f32 0.0, %v807
      %v809 = vpop.f32.mrf.mxu0
      %v810 = vadd.f32 0.0, %v809
      %811 = vmatmul.bf16.gmra.mxu0 %v726
      %v812 = vpop.f32.mrf.mxu0
      %v813 = vadd.f32 0.0, %v812
      %v814 = vpop.f32.mrf.mxu0
      %v815 = vadd.f32 0.0, %v814
      %816 = vmatmul.bf16.gmra.mxu0 %v729
      %v817 = vpop.f32.mrf.mxu0
      %v818 = vadd.f32 0.0, %v817
      %v819 = vpop.f32.mrf.mxu0
      %v820 = vadd.f32 0.0, %v819
      %821 = vmatmul.bf16.gmra.mxu0 %v732
      %v822 = vpop.f32.mrf.mxu0
      %v823 = vadd.f32 0.0, %v822
      %v824 = vpop.f32.mrf.mxu0
      %v825 = vadd.f32 0.0, %v824
      %826 = vdwg.mxu0
      %v827 = vadd.f32 %v493, %v748
      %v828 = vadd.f32 %v495, %v750
      %v829 = vadd.f32 %v498, %v753
      %v830 = vadd.f32 %v500, %v755
      %v831 = vadd.f32 %v503, %v758
      %v832 = vadd.f32 %v505, %v760
      %v833 = vadd.f32 %v508, %v763
      %v834 = vadd.f32 %v510, %v765
      %v835 = vadd.f32 %v513, %v768
      %v836 = vadd.f32 %v515, %v770
      %v837 = vadd.f32 %v518, %v773
      %v838 = vadd.f32 %v520, %v775
      %v839 = vadd.f32 %v523, %v778
      %v840 = vadd.f32 %v525, %v780
      %v841 = vadd.f32 %v528, %v783
      %v842 = vadd.f32 %v530, %v785
      %v843 = vadd.f32 %v533, %v788
      %v844 = vadd.f32 %v535, %v790
      %v845 = vadd.f32 %v538, %v793
      %v846 = vadd.f32 %v540, %v795
      %v847 = vadd.f32 %v543, %v798
      %v848 = vadd.f32 %v545, %v800
      %v849 = vadd.f32 %v548, %v803
      %v850 = vadd.f32 %v550, %v805
      %v851 = vadd.f32 %v553, %v808
      %v852 = vadd.f32 %v555, %v810
      %v853 = vadd.f32 %v558, %v813
      %v854 = vadd.f32 %v560, %v815
      %v855 = vadd.f32 %v563, %v818
      %v856 = vadd.f32 %v565, %v820
      %v857 = vadd.f32 %v568, %v823
      %v858 = vadd.f32 %v570, %v825
      %v859 = vld [vmem:[%s5] sm:$0x1]
      %v861 = vperm.slane %v859, 0
      %v863 = vadd.f32 %v827, %v861
      %v864 = vadd.f32 %v828, %v861
      %v865 = vadd.f32 %v829, %v861
      %v866 = vadd.f32 %v830, %v861
      %v867 = vadd.f32 %v831, %v861
      %v868 = vadd.f32 %v832, %v861
      %v869 = vadd.f32 %v833, %v861
      %v870 = vadd.f32 %v834, %v861
      %v871 = vadd.f32 %v835, %v861
      %v872 = vadd.f32 %v836, %v861
      %v873 = vadd.f32 %v837, %v861
      %v874 = vadd.f32 %v838, %v861
      %v875 = vadd.f32 %v839, %v861
      %v876 = vadd.f32 %v840, %v861
      %v877 = vadd.f32 %v841, %v861
      %v878 = vadd.f32 %v842, %v861
      %v879 = vadd.f32 %v843, %v861
      %v880 = vadd.f32 %v844, %v861
      %v881 = vadd.f32 %v845, %v861
      %v882 = vadd.f32 %v846, %v861
      %v883 = vadd.f32 %v847, %v861
      %v884 = vadd.f32 %v848, %v861
      %v885 = vadd.f32 %v849, %v861
      %v886 = vadd.f32 %v850, %v861
      %v887 = vadd.f32 %v851, %v861
      %v888 = vadd.f32 %v852, %v861
      %v889 = vadd.f32 %v853, %v861
      %v890 = vadd.f32 %v854, %v861
      %v891 = vadd.f32 %v855, %v861
      %v892 = vadd.f32 %v856, %v861
      %v893 = vadd.f32 %v857, %v861
      %v894 = vadd.f32 %v858, %v861
      %895 = vst [vmem:[%s275] sm:$0xff] %v863
      %896 = vst [vmem:[%s275 + $0x8] sm:$0xff] %v864
      %897 = vst [vmem:[%s275 + $0x10] sm:$0xff] %v865
      %898 = vst [vmem:[%s275 + $0x18] sm:$0xff] %v866
      %899 = vst [vmem:[%s275 + $0x20] sm:$0xff] %v867
      %900 = vst [vmem:[%s275 + $0x28] sm:$0xff] %v868
      %901 = vst [vmem:[%s275 + $0x30] sm:$0xff] %v869
      %902 = vst [vmem:[%s275 + $0x38] sm:$0xff] %v870
      %903 = vst [vmem:[%s275 + $0x40] sm:$0xff] %v871
      %904 = vst [vmem:[%s275 + $0x48] sm:$0xff] %v872
      %905 = vst [vmem:[%s275 + $0x50] sm:$0xff] %v873
      %906 = vst [vmem:[%s275 + $0x58] sm:$0xff] %v874
      %907 = vst [vmem:[%s275 + $0x60] sm:$0xff] %v875
      %908 = vst [vmem:[%s275 + $0x68] sm:$0xff] %v876
      %909 = vst [vmem:[%s275 + $0x70] sm:$0xff] %v877
      %910 = vst [vmem:[%s275 + $0x78] sm:$0xff] %v878
      %911 = vst [vmem:[%s275 + $0x80] sm:$0xff] %v879
      %912 = vst [vmem:[%s275 + $0x88] sm:$0xff] %v880
      %913 = vst [vmem:[%s275 + $0x90] sm:$0xff] %v881
      %914 = vst [vmem:[%s275 + $0x98] sm:$0xff] %v882
      %915 = vst [vmem:[%s275 + $0xa0] sm:$0xff] %v883
      %916 = vst [vmem:[%s275 + $0xa8] sm:$0xff] %v884
      %917 = vst [vmem:[%s275 + $0xb0] sm:$0xff] %v885
      %918 = vst [vmem:[%s275 + $0xb8] sm:$0xff] %v886
      %919 = vst [vmem:[%s275 + $0xc0] sm:$0xff] %v887
      %920 = vst [vmem:[%s275 + $0xc8] sm:$0xff] %v888
      %921 = vst [vmem:[%s275 + $0xd0] sm:$0xff] %v889
      %922 = vst [vmem:[%s275 + $0xd8] sm:$0xff] %v890
      %923 = vst [vmem:[%s275 + $0xe0] sm:$0xff] %v891
      %924 = vst [vmem:[%s275 + $0xe8] sm:$0xff] %v892
      %925 = vst [vmem:[%s275 + $0xf0] sm:$0xff] %v893
      %926 = vst [vmem:[%s275 + $0xf8] sm:$0xff] %v894
      %s927 = smul.u32 32, %s17
      %p928 = scmp.lt.s32.totalorder %s927, 63
      %s929 = scalar_select %p928, %s927, 63
      %s930 = smul.addr %s929, 8
      %s931 = scalar_lea.vmem %s6, %s930
      // Predicated region
      $region45: #{residual_block_forward.3} parent=43 // pred_check
        %p932 = pneg %p171
      $region46: #{residual_block_forward.3} parent=43 // pred_check_branch
        %934 = sbr.rel (%p932) target = $region48
      $region47: #{residual_block_forward.3} parent=43 // pred_region
        %s935 = smul.u32 32, %s17
      $region48: #{residual_block_forward.3} parent=43 // pred_fallthru
        _
    $region44: #{residual_block_forward.3} parent=5 // pred_fallthru
      _
    %p936 = scmp.le.s32.totalorder 2, %s12
    // Predicated region
    $region49: #{residual_block_forward.3} parent=5 // pred_check
      %p937 = pneg %p936
    $region50: #{residual_block_forward.3} parent=5 // pred_check_branch
      %939 = sbr.rel (%p937) target = $region52
    $region51: #{residual_block_forward.3} parent=5 // pred_region
      %s940 = ssub.s32 %s12, 2
      // Predicated region
      $region53: #{residual_block_forward.3} parent=51 // pred_check
        %p941 = pneg %p177
      $region54: #{residual_block_forward.3} parent=51 // pred_check_branch
        %943 = sbr.rel (%p941) target = $region56
      $region55: #{residual_block_forward.3} parent=51 // pred_region
        %s944 = smul.u32 32, %s18
        %p945 = scmp.lt.s32.totalorder %s944, 63
        %s946 = scalar_select %p945, %s944, 63
        %s947 = smul.addr %s946, 8
        %s948 = scalar_lea.vmem %s6, %s947
      $region56: #{residual_block_forward.3} parent=51 // pred_fallthru
        _
    $region52: #{residual_block_forward.3} parent=5 // pred_fallthru
      _
  $region6: #{residual_block_forward.3} parent=0 // loop_footer
    %s16 = sadd.s32 1, %s12
  $region7: #{residual_block_forward.3} parent=0 // loop_footer_branch
    %11 = sbr.rel target = $region3
  $region8: #{residual_block_forward.3} parent=0 // loop_exit
    _

</llo_original>
